<compile_context>
chip_gen: v6e
topology: v6e:2x2x1
jax: 0.10.0
libtpu: 0.0.40
codegen_flags: <defaults>
</compile_context>

<pallas_src>
import functools

import jax
import jax.numpy as jnp
from jax import lax
from jax.experimental import pallas as pl
from jax.experimental.pallas import tpu as pltpu

WINDOW_SIZE = 9
EPSILON = 1e-5
LOSS_WEIGHT = 1.0
BALANCE_WEIGHT = 0.2


def _lncc_kernel(pred_ref, targ_ref, mask_ref, out_p_ref, out_n_ref,
                 acc_p_ref, acc_n_ref, ybuf_ref, *,
                 window_size, epsilon, compute_dtype):
    NB, n_mask_ch, H, W = mask_ref.shape
    BH = NB * H                  # rows per product map in the stacked layout
    RT = 10 * BH                 # total stacked rows (10 maps)
    pad = window_size // 2
    padb = ((pad + 7) // 8) * 8  # 8-aligned zero border of the shift buffer
    k = pl.program_id(1)

    @pl.when(k == 0)
    def _init():
        acc_p_ref[...] = jnp.zeros_like(acc_p_ref)
        acc_n_ref[...] = jnp.zeros_like(acc_n_ref)
        ybuf_ref[...] = jnp.zeros_like(ybuf_ref)   # borders stay zero afterwards

    p = pred_ref[...].astype(jnp.float32)          # (BH, W)
    t = targ_ref[...].astype(jnp.float32)          # (BH, W)
    m4 = mask_ref[...].astype(jnp.float32)         # (NB, Cm, H, W)

    # channel argmax (first maximum wins), matching torch.argmax / jnp.argmax
    best = m4[:, 0]
    midx = jnp.zeros_like(best)
    for c in range(1, n_mask_ch):
        v = m4[:, c]
        upd = v > best
        midx = jnp.where(upd, jnp.float32(c), midx)
        best = jnp.where(upd, v, best)
    midx = midx.reshape(BH, W)

    wp = 1.0 - midx        # "positive" pair weights (mask == 0 keeps pixel)
    wn = midx              # "negative" pair weights
    a_p, b_p = wp * p, wp * t
    a_n, b_n = wn * p, wn * t

    # ---- stage 1: W-direction box filter as ONE stacked MXU matmul --------
    x1 = jnp.concatenate(
        [a_p, b_p, a_p * a_p, b_p * b_p, a_p * b_p,
         a_n, b_n, a_n * a_n, b_n * b_n, a_n * b_n], axis=0)     # (RT, W)

    iw = lax.broadcasted_iota(jnp.int32, (W, W), 0)
    jw = lax.broadcasted_iota(jnp.int32, (W, W), 1)
    s_w = (jnp.abs(iw - jw) <= pad).astype(compute_dtype)        # banded ones

    y1 = jnp.dot(x1.astype(compute_dtype), s_w,
                 preferred_element_type=jnp.float32)             # (RT, W)

    # ---- stage 2: H-direction box filter as shift-and-add over sublanes ---
    ybuf_ref[pl.ds(padb, RT), :] = y1
    h2d = lax.broadcasted_iota(jnp.int32, (H, W), 0)
    h_idx = jnp.concatenate([h2d] * (10 * NB), axis=0)           # row-in-image

    y2 = y1                                                      # d = 0 term
    for d in range(1, pad + 1):
        up = ybuf_ref[pl.ds(padb + d, RT), :]                    # y1[r + d]
        dn = ybuf_ref[pl.ds(padb - d, RT), :]                    # y1[r - d]
        y2 = (y2 + jnp.where(h_idx < H - d, up, 0.0)
                 + jnp.where(h_idx >= d, dn, 0.0))

    # ---- lncc from the stacked local sums ----------------------------------
    ws2 = jnp.float32(window_size * window_size)
    eps = jnp.float32(epsilon)

    def lncc(first_map):
        base = first_map * BH
        la = y2[base + 0 * BH: base + 1 * BH, :]
        lb = y2[base + 1 * BH: base + 2 * BH, :]
        laa = y2[base + 2 * BH: base + 3 * BH, :]
        lbb = y2[base + 3 * BH: base + 4 * BH, :]
        lab = y2[base + 4 * BH: base + 5 * BH, :]
        a_mean = la / ws2
        b_mean = lb / ws2
        a_var = jnp.maximum(laa - a_mean * a_mean, 0.0)
        b_var = jnp.maximum(lbb - b_mean * b_mean, 0.0)
        cov = lab - a_mean * b_mean
        # cov / (sqrt(av+eps) * sqrt(bv+eps)) as a single EUP rsqrt
        return cov * lax.rsqrt((a_var + eps) * (b_var + eps))

    acc_p_ref[...] += lncc(0)    # maps 0..4: positive pair
    acc_n_ref[...] += lncc(5)    # maps 5..9: negative pair

    @pl.when(k == pl.num_programs(1) - 1)
    def _finalize():
        out_p_ref[...] = jnp.zeros((1, 1, 1), jnp.float32) + jnp.sum(acc_p_ref[...])
        out_n_ref[...] = jnp.zeros((1, 1, 1), jnp.float32) + jnp.sum(acc_n_ref[...])


def c_lncc_loss(pred, target, mask, *, window_size=WINDOW_SIZE,
                loss_weight=LOSS_WEIGHT, balance_weight=BALANCE_WEIGHT,
                epsilon=EPSILON, use_bf16_matmul=False, images_per_step=None):
    """Pallas TPU implementation of C_LNCCLoss.forward.

    pred, target: (N, 1, H, W); mask: (N, C_mask, H, W)  (NCHW, like PyTorch).
    """
    N, C, H, W = pred.shape
    assert C == 1, "LNCC conv kernel is (1, 1, ws, ws) => single-channel input"
    Nm, Cm, Hm, Wm = mask.shape
    assert (Nm, Hm, Wm) == (N, H, W)
    assert window_size % 2 == 1, "odd window ('same' symmetric padding) expected"
    assert H % 8 == 0, "sublane-stacked layout expects H to be a multiple of 8"

    # ---- host-side tiling choices ------------------------------------------
    if images_per_step is None:
        # enough stacked rows to feed a 256-row MXU (v6e/v7x; >=128 on v5e),
        # capped so the per-step VMEM working set stays well under the limit.
        nb = max(1, -(-256 // (10 * H)))
        per_image_bytes = 10 * H * W * 4 * 4       # stacked maps + intermediates
        nb = min(nb, max(1, (12 * 1024 * 1024) // per_image_bytes), N)
    else:
        nb = max(1, min(images_per_step, N))

    n_blocks = -(-N // nb)
    ns = 2 if n_blocks >= 2 else 1     # leading "parallel" axis (v7x 2 TCs)
    nk = -(-n_blocks // ns)
    n_pad = ns * nk * nb

    p_img = pred[:, 0].astype(jnp.float32)
    t_img = target[:, 0].astype(jnp.float32)
    m_all = mask.astype(jnp.float32)
    if n_pad != N:
        extra = n_pad - N
        # zero-padded images contribute exactly 0 to both lncc sums
        p_img = jnp.pad(p_img, ((0, extra), (0, 0), (0, 0)))
        t_img = jnp.pad(t_img, ((0, extra), (0, 0), (0, 0)))
        m_all = jnp.pad(m_all, ((0, extra), (0, 0), (0, 0), (0, 0)))

    # flatten (N, H, W) -> (N*H, W): free reshape, 2-D row-stacked blocks
    p2 = p_img.reshape(n_pad * H, W)
    t2 = t_img.reshape(n_pad * H, W)

    kernel = functools.partial(
        _lncc_kernel, window_size=window_size, epsilon=epsilon,
        compute_dtype=jnp.bfloat16 if use_bf16_matmul else jnp.float32)

    pad_w = window_size // 2
    padb = ((pad_w + 7) // 8) * 8

    sum_p, sum_n = pl.pallas_call(
        kernel,
        out_shape=(jax.ShapeDtypeStruct((ns, 1, 1), jnp.float32),
                   jax.ShapeDtypeStruct((ns, 1, 1), jnp.float32)),
        grid_spec=pltpu.PrefetchScalarGridSpec(
            num_scalar_prefetch=0,
            grid=(ns, nk),
            in_specs=[
                pl.BlockSpec((nb * H, W), lambda s, k: (s * nk + k, 0)),
                pl.BlockSpec((nb * H, W), lambda s, k: (s * nk + k, 0)),
                pl.BlockSpec((nb, Cm, H, W), lambda s, k: (s * nk + k, 0, 0, 0)),
            ],
            out_specs=(pl.BlockSpec((1, 1, 1), lambda s, k: (s, 0, 0)),
                       pl.BlockSpec((1, 1, 1), lambda s, k: (s, 0, 0))),
            scratch_shapes=[
                pltpu.VMEM((nb * H, W), jnp.float32),                   # acc_p
                pltpu.VMEM((nb * H, W), jnp.float32),                   # acc_n
                pltpu.VMEM((10 * nb * H + 2 * padb, W), jnp.float32),   # shift buf
            ],
        ),
        compiler_params=pltpu.CompilerParams(
            dimension_semantics=("parallel", "arbitrary"),
            vmem_limit_bytes=32 * 1024 * 1024),
    )(p2, t2, m_all)

    denom = float(N * 1 * H * W)       # torch.mean over the ORIGINAL shape
    loss_p = 1.0 - jnp.sum(sum_p) / denom
    loss_n = 1.0 - jnp.sum(sum_n) / denom
    return loss_weight * (balance_weight * loss_p
                          - (1.0 - balance_weight) * loss_n)


# ---------------- pure-JAX reference (mirrors the PyTorch code) ----------------
def _local_sum_ref(x, ws):
    k = jnp.ones((1, 1, ws, ws), x.dtype)
    pad = ws // 2
    return lax.conv_general_dilated(
        x, k, window_strides=(1, 1), padding=[(pad, pad), (pad, pad)],
        dimension_numbers=('NCHW', 'OIHW', 'NCHW'))


def _lncc_loss_ref(pred, target, ws, eps):
    pm = _local_sum_ref(pred, ws) / ws ** 2
    tm = _local_sum_ref(target, ws) / ws ** 2
    pv = jnp.maximum(_local_sum_ref(pred ** 2, ws) - pm ** 2, 0.0)
    tv = jnp.maximum(_local_sum_ref(target ** 2, ws) - tm ** 2, 0.0)
    cov = _local_sum_ref(pred * target, ws) - pm * tm
    lncc = cov / (jnp.sqrt(pv + eps) * jnp.sqrt(tv + eps))
    return 1.0 - jnp.mean(lncc)


def c_lncc_loss_ref(pred, target, mask, *, window_size=WINDOW_SIZE,
                    loss_weight=LOSS_WEIGHT, balance_weight=BALANCE_WEIGHT,
                    epsilon=EPSILON):
    m = jnp.argmax(mask, axis=1)[:, None].astype(pred.dtype)
    p1, p2 = (1.0 - m) * pred, (1.0 - m) * target
    n1, n2 = m * pred, m * target
    return loss_weight * (
        balance_weight * _lncc_loss_ref(p1, p2, window_size, epsilon)
        - (1.0 - balance_weight) * _lncc_loss_ref(n1, n2, window_size, epsilon))


if __name__ == "__main__":
    key = jax.random.PRNGKey(0)
    k1, k2, k3, k4, k5, k6 = jax.random.split(key, 6)

    # config 1: small shapes consistent with the module
    N, H, W = 2, 16, 16
    pred = jax.random.normal(k1, (N, 1, H, W), dtype=jnp.float32)
    target = jax.random.normal(k2, (N, 1, H, W), dtype=jnp.float32)
    mask = jax.random.normal(k3, (N, 2, H, W), dtype=jnp.float32)

    out = jax.block_until_ready(c_lncc_loss(pred, target, mask))
    ref = c_lncc_loss_ref(pred, target, mask)
    assert jnp.allclose(out, ref, rtol=2e-4, atol=2e-4), (out, ref)

    # reduced-precision MXU operands (native bf16 path on v6e / v7x)
    out_bf16 = jax.block_until_ready(
        c_lncc_loss(pred, target, mask, use_bf16_matmul=True))
    assert jnp.allclose(out_bf16, ref, rtol=5e-2, atol=5e-2), (out_bf16, ref)

    # config 2: odd batch / 3 mask channels (exercises batch padding and the
    # per-core partial-sum output path)
    N2 = 3
    pred2 = jax.random.normal(k4, (N2, 1, H, W), dtype=jnp.float32)
    target2 = jax.random.normal(k5, (N2, 1, H, W), dtype=jnp.float32)
    mask2 = jax.random.normal(k6, (N2, 3, H, W), dtype=jnp.float32)
    out2 = jax.block_until_ready(c_lncc_loss(pred2, target2, mask2))
    ref2 = c_lncc_loss_ref(pred2, target2, mask2)
    assert jnp.allclose(out2, ref2, rtol=2e-4, atol=2e-4), (out2, ref2)

    print("KERNEL_OK")
</pallas_src>

<mosaic_0001>
module attributes {stable_mosaic.version = 11 : i64} {
  func.func @_lncc_kernel(%arg0: i32, %arg1: i32, %arg2: memref<32x16xf32, #tpu.memory_space<vmem>>, %arg3: memref<32x16xf32, #tpu.memory_space<vmem>>, %arg4: memref<2x2x16x16xf32, #tpu.memory_space<vmem>>, %arg5: memref<1x1x1xf32, #tpu.memory_space<vmem>>, %arg6: memref<1x1x1xf32, #tpu.memory_space<vmem>>, %arg7: memref<32x16xf32, #tpu.memory_space<vmem>>, %arg8: memref<32x16xf32, #tpu.memory_space<vmem>>, %arg9: memref<336x16xf32, #tpu.memory_space<vmem>>) attributes {dimension_semantics = [#tpu.dimension_semantics<parallel>, #tpu.dimension_semantics<arbitrary>], iteration_bounds = array<i64: 1, 1>, scalar_prefetch = 0 : i64, scratch_operands = 3 : i64, tpu.core_type = #tpu.core_type<tc>, window_params = [{transform_indices = @transform_0, window_bounds = array<i64: 32, 16>}, {transform_indices = @transform_1, window_bounds = array<i64: 32, 16>}, {transform_indices = @transform_2, window_bounds = array<i64: 2, 2, 16, 16>}, {transform_indices = @transform_3, window_bounds = array<i64: 1, 1, 1>}, {transform_indices = @transform_4, window_bounds = array<i64: 1, 1, 1>}]} {
    %c0_i32 = arith.constant 0 : i32
    %0 = arith.cmpi eq, %arg1, %c0_i32 : i32
    %1 = arith.extui %0 : i1 to i32
    %c0_i32_0 = arith.constant 0 : i32
    %2 = arith.cmpi ne, %1, %c0_i32_0 : i32
    scf.if %2 {
      %cst_51 = arith.constant 0.000000e+00 : f32
      %151 = vector.broadcast %cst_51 : f32 to vector<32x16xf32>
      %c0_52 = arith.constant 0 : index
      %c0_53 = arith.constant 0 : index
      %152 = vector.load %arg7[%c0_52, %c0_53] : memref<32x16xf32, #tpu.memory_space<vmem>>, vector<32x16xf32>
      tpu.vector_store %arg7[%c0_52, %c0_53], %151 {strides = array<i32>} : memref<32x16xf32, #tpu.memory_space<vmem>>, vector<32x16xf32>,
      %cst_54 = arith.constant 0.000000e+00 : f32
      %153 = vector.broadcast %cst_54 : f32 to vector<32x16xf32>
      %c0_55 = arith.constant 0 : index
      %c0_56 = arith.constant 0 : index
      %154 = vector.load %arg8[%c0_55, %c0_56] : memref<32x16xf32, #tpu.memory_space<vmem>>, vector<32x16xf32>
      tpu.vector_store %arg8[%c0_55, %c0_56], %153 {strides = array<i32>} : memref<32x16xf32, #tpu.memory_space<vmem>>, vector<32x16xf32>,
      %cst_57 = arith.constant 0.000000e+00 : f32
      %155 = vector.broadcast %cst_57 : f32 to vector<336x16xf32>
      %c0_58 = arith.constant 0 : index
      %c0_59 = arith.constant 0 : index
      %156 = vector.load %arg9[%c0_58, %c0_59] : memref<336x16xf32, #tpu.memory_space<vmem>>, vector<336x16xf32>
      tpu.vector_store %arg9[%c0_58, %c0_59], %155 {strides = array<i32>} : memref<336x16xf32, #tpu.memory_space<vmem>>, vector<336x16xf32>,
    } else {
    }
    %c0 = arith.constant 0 : index
    %c0_1 = arith.constant 0 : index
    %3 = vector.load %arg2[%c0, %c0_1] : memref<32x16xf32, #tpu.memory_space<vmem>>, vector<32x16xf32>
    %c0_2 = arith.constant 0 : index
    %c0_3 = arith.constant 0 : index
    %4 = vector.load %arg3[%c0_2, %c0_3] : memref<32x16xf32, #tpu.memory_space<vmem>>, vector<32x16xf32>
    %c0_4 = arith.constant 0 : index
    %c0_5 = arith.constant 0 : index
    %c0_6 = arith.constant 0 : index
    %c0_7 = arith.constant 0 : index
    %5 = vector.load %arg4[%c0_4, %c0_5, %c0_6, %c0_7] : memref<2x2x16x16xf32, #tpu.memory_space<vmem>>, vector<2x2x16x16xf32>
    %6 = vector.extract_strided_slice %5 {offsets = [0, 0, 0, 0], sizes = [2, 1, 16, 16], strides = [1, 1, 1, 1]} : vector<2x2x16x16xf32> to vector<2x1x16x16xf32>
    %7 = vector.shape_cast %6 : vector<2x1x16x16xf32> to vector<2x16x16xf32>
    %cst = arith.constant 0.000000e+00 : f32
    %8 = vector.broadcast %cst : f32 to vector<2x16x16xf32>
    %9 = vector.extract_strided_slice %5 {offsets = [0, 1, 0, 0], sizes = [2, 1, 16, 16], strides = [1, 1, 1, 1]} : vector<2x2x16x16xf32> to vector<2x1x16x16xf32>
    %10 = vector.shape_cast %9 : vector<2x1x16x16xf32> to vector<2x16x16xf32>
    %11 = arith.cmpf ogt, %10, %7 : vector<2x16x16xf32>
    %cst_8 = arith.constant 1.000000e+00 : f32
    %12 = vector.broadcast %cst_8 : f32 to vector<2x16x16xf32>
    %13 = arith.select %11, %12, %8 : vector<2x16x16xi1>, vector<2x16x16xf32>
    %14 = vector.shape_cast %13 : vector<2x16x16xf32> to vector<32x16xf32>
    %cst_9 = arith.constant 1.000000e+00 : f32
    %15 = vector.broadcast %cst_9 : f32 to vector<32x16xf32>
    %16 = arith.subf %15, %14 : vector<32x16xf32>
    %17 = arith.mulf %16, %3 : vector<32x16xf32>
    %18 = arith.mulf %16, %4 : vector<32x16xf32>
    %19 = arith.mulf %14, %3 : vector<32x16xf32>
    %20 = arith.mulf %14, %4 : vector<32x16xf32>
    %21 = arith.mulf %17, %17 : vector<32x16xf32>
    %22 = arith.mulf %18, %18 : vector<32x16xf32>
    %23 = arith.mulf %17, %18 : vector<32x16xf32>
    %24 = arith.mulf %19, %19 : vector<32x16xf32>
    %25 = arith.mulf %20, %20 : vector<32x16xf32>
    %26 = arith.mulf %19, %20 : vector<32x16xf32>
    %27 = tpu.concatenate %17, %18, %21, %22, %23, %19, %20, %24, %25, %26 in 0 : vector<32x16xf32>, vector<32x16xf32>, vector<32x16xf32>, vector<32x16xf32>, vector<32x16xf32>, vector<32x16xf32>, vector<32x16xf32>, vector<32x16xf32>, vector<32x16xf32>, vector<32x16xf32> -> vector<320x16xf32>
    %28 = tpu.iota {dimensions = array<i32: 0>} : vector<16x16xi32>
    %29 = tpu.iota {dimensions = array<i32: 1>} : vector<16x16xi32>
    %30 = arith.subi %28, %29 : vector<16x16xi32>
    %31 = math.absi %30 : vector<16x16xi32>
    %c4_i32 = arith.constant 4 : i32
    %32 = vector.broadcast %c4_i32 : i32 to vector<16x16xi32>
    %33 = arith.cmpi sle, %31, %32 : vector<16x16xi32>
    %34 = arith.extui %33 : vector<16x16xi1> to vector<16x16xi32>
    %35 = arith.sitofp %34 : vector<16x16xi32> to vector<16x16xf32>
    %cst_10 = arith.constant dense<0.000000e+00> : vector<320x16xf32>
    %36 = tpu.matmul %27, %35, %cst_10 {dimension_numbers = #tpu.dot_dimension_numbers<[1], [0], [0], [1], [0, 0, 1, 1], [], []>} : vector<320x16xf32>, vector<16x16xf32>, vector<320x16xf32> -> vector<320x16xf32>
    %c8 = arith.constant 8 : index
    %c0_11 = arith.constant 0 : index
    %37 = vector.load %arg9[%c8, %c0_11] : memref<336x16xf32, #tpu.memory_space<vmem>>, vector<320x16xf32>
    tpu.vector_store %arg9[%c8, %c0_11], %36 {strides = array<i32>} : memref<336x16xf32, #tpu.memory_space<vmem>>, vector<320x16xf32>,
    %38 = tpu.iota {dimensions = array<i32: 0>} : vector<16x16xi32>
    %39 = tpu.concatenate %38, %38, %38, %38, %38, %38, %38, %38, %38, %38, %38, %38, %38, %38, %38, %38 in 0 : vector<16x16xi32>, vector<16x16xi32>, vector<16x16xi32>, vector<16x16xi32>, vector<16x16xi32>, vector<16x16xi32>, vector<16x16xi32>, vector<16x16xi32>, vector<16x16xi32>, vector<16x16xi32>, vector<16x16xi32>, vector<16x16xi32>, vector<16x16xi32>, vector<16x16xi32>, vector<16x16xi32>, vector<16x16xi32> -> vector<256x16xi32>
    %40 = tpu.concatenate %38, %38, %38, %38 in 0 : vector<16x16xi32>, vector<16x16xi32>, vector<16x16xi32>, vector<16x16xi32> -> vector<64x16xi32>
    %41 = tpu.concatenate %39, %40 in 0 : vector<256x16xi32>, vector<64x16xi32> -> vector<320x16xi32>
    %c9 = arith.constant 9 : index
    %c0_12 = arith.constant 0 : index
    %42 = vector.load %arg9[%c9, %c0_12] : memref<336x16xf32, #tpu.memory_space<vmem>>, vector<320x16xf32>
    %c7 = arith.constant 7 : index
    %c0_13 = arith.constant 0 : index
    %43 = vector.load %arg9[%c7, %c0_13] : memref<336x16xf32, #tpu.memory_space<vmem>>, vector<320x16xf32>
    %c15_i32 = arith.constant 15 : i32
    %44 = vector.broadcast %c15_i32 : i32 to vector<320x16xi32>
    %45 = arith.cmpi slt, %41, %44 : vector<320x16xi32>
    %cst_14 = arith.constant 0.000000e+00 : f32
    %46 = vector.broadcast %cst_14 : f32 to vector<320x16xf32>
    %47 = arith.select %45, %42, %46 : vector<320x16xi1>, vector<320x16xf32>
    %48 = arith.addf %36, %47 : vector<320x16xf32>
    %c1_i32 = arith.constant 1 : i32
    %49 = vector.broadcast %c1_i32 : i32 to vector<320x16xi32>
    %50 = arith.cmpi sge, %41, %49 : vector<320x16xi32>
    %cst_15 = arith.constant 0.000000e+00 : f32
    %51 = vector.broadcast %cst_15 : f32 to vector<320x16xf32>
    %52 = arith.select %50, %43, %51 : vector<320x16xi1>, vector<320x16xf32>
    %53 = arith.addf %48, %52 : vector<320x16xf32>
    %c10 = arith.constant 10 : index
    %c0_16 = arith.constant 0 : index
    %54 = vector.load %arg9[%c10, %c0_16] : memref<336x16xf32, #tpu.memory_space<vmem>>, vector<320x16xf32>
    %c6 = arith.constant 6 : index
    %c0_17 = arith.constant 0 : index
    %55 = vector.load %arg9[%c6, %c0_17] : memref<336x16xf32, #tpu.memory_space<vmem>>, vector<320x16xf32>
    %c14_i32 = arith.constant 14 : i32
    %56 = vector.broadcast %c14_i32 : i32 to vector<320x16xi32>
    %57 = arith.cmpi slt, %41, %56 : vector<320x16xi32>
    %cst_18 = arith.constant 0.000000e+00 : f32
    %58 = vector.broadcast %cst_18 : f32 to vector<320x16xf32>
    %59 = arith.select %57, %54, %58 : vector<320x16xi1>, vector<320x16xf32>
    %60 = arith.addf %53, %59 : vector<320x16xf32>
    %c2_i32 = arith.constant 2 : i32
    %61 = vector.broadcast %c2_i32 : i32 to vector<320x16xi32>
    %62 = arith.cmpi sge, %41, %61 : vector<320x16xi32>
    %cst_19 = arith.constant 0.000000e+00 : f32
    %63 = vector.broadcast %cst_19 : f32 to vector<320x16xf32>
    %64 = arith.select %62, %55, %63 : vector<320x16xi1>, vector<320x16xf32>
    %65 = arith.addf %60, %64 : vector<320x16xf32>
    %c11 = arith.constant 11 : index
    %c0_20 = arith.constant 0 : index
    %66 = vector.load %arg9[%c11, %c0_20] : memref<336x16xf32, #tpu.memory_space<vmem>>, vector<320x16xf32>
    %c5 = arith.constant 5 : index
    %c0_21 = arith.constant 0 : index
    %67 = vector.load %arg9[%c5, %c0_21] : memref<336x16xf32, #tpu.memory_space<vmem>>, vector<320x16xf32>
    %c13_i32 = arith.constant 13 : i32
    %68 = vector.broadcast %c13_i32 : i32 to vector<320x16xi32>
    %69 = arith.cmpi slt, %41, %68 : vector<320x16xi32>
    %cst_22 = arith.constant 0.000000e+00 : f32
    %70 = vector.broadcast %cst_22 : f32 to vector<320x16xf32>
    %71 = arith.select %69, %66, %70 : vector<320x16xi1>, vector<320x16xf32>
    %72 = arith.addf %65, %71 : vector<320x16xf32>
    %c3_i32 = arith.constant 3 : i32
    %73 = vector.broadcast %c3_i32 : i32 to vector<320x16xi32>
    %74 = arith.cmpi sge, %41, %73 : vector<320x16xi32>
    %cst_23 = arith.constant 0.000000e+00 : f32
    %75 = vector.broadcast %cst_23 : f32 to vector<320x16xf32>
    %76 = arith.select %74, %67, %75 : vector<320x16xi1>, vector<320x16xf32>
    %77 = arith.addf %72, %76 : vector<320x16xf32>
    %c12 = arith.constant 12 : index
    %c0_24 = arith.constant 0 : index
    %78 = vector.load %arg9[%c12, %c0_24] : memref<336x16xf32, #tpu.memory_space<vmem>>, vector<320x16xf32>
    %c4 = arith.constant 4 : index
    %c0_25 = arith.constant 0 : index
    %79 = vector.load %arg9[%c4, %c0_25] : memref<336x16xf32, #tpu.memory_space<vmem>>, vector<320x16xf32>
    %c12_i32 = arith.constant 12 : i32
    %80 = vector.broadcast %c12_i32 : i32 to vector<320x16xi32>
    %81 = arith.cmpi slt, %41, %80 : vector<320x16xi32>
    %cst_26 = arith.constant 0.000000e+00 : f32
    %82 = vector.broadcast %cst_26 : f32 to vector<320x16xf32>
    %83 = arith.select %81, %78, %82 : vector<320x16xi1>, vector<320x16xf32>
    %84 = arith.addf %77, %83 : vector<320x16xf32>
    %c4_i32_27 = arith.constant 4 : i32
    %85 = vector.broadcast %c4_i32_27 : i32 to vector<320x16xi32>
    %86 = arith.cmpi sge, %41, %85 : vector<320x16xi32>
    %cst_28 = arith.constant 0.000000e+00 : f32
    %87 = vector.broadcast %cst_28 : f32 to vector<320x16xf32>
    %88 = arith.select %86, %79, %87 : vector<320x16xi1>, vector<320x16xf32>
    %89 = arith.addf %84, %88 : vector<320x16xf32>
    %c0_29 = arith.constant 0 : index
    %c0_30 = arith.constant 0 : index
    %90 = vector.load %arg7[%c0_29, %c0_30] : memref<32x16xf32, #tpu.memory_space<vmem>>, vector<32x16xf32>
    %91 = vector.extract_strided_slice %89 {offsets = [0, 0], sizes = [32, 16], strides = [1, 1]} : vector<320x16xf32> to vector<32x16xf32>
    %92 = vector.extract_strided_slice %89 {offsets = [32, 0], sizes = [32, 16], strides = [1, 1]} : vector<320x16xf32> to vector<32x16xf32>
    %93 = vector.extract_strided_slice %89 {offsets = [64, 0], sizes = [32, 16], strides = [1, 1]} : vector<320x16xf32> to vector<32x16xf32>
    %94 = vector.extract_strided_slice %89 {offsets = [96, 0], sizes = [32, 16], strides = [1, 1]} : vector<320x16xf32> to vector<32x16xf32>
    %95 = vector.extract_strided_slice %89 {offsets = [128, 0], sizes = [32, 16], strides = [1, 1]} : vector<320x16xf32> to vector<32x16xf32>
    %cst_31 = arith.constant 8.100000e+01 : f32
    %96 = vector.broadcast %cst_31 : f32 to vector<32x16xf32>
    %97 = arith.divf %91, %96 : vector<32x16xf32>
    %cst_32 = arith.constant 8.100000e+01 : f32
    %98 = vector.broadcast %cst_32 : f32 to vector<32x16xf32>
    %99 = arith.divf %92, %98 : vector<32x16xf32>
    %100 = arith.mulf %97, %97 : vector<32x16xf32>
    %101 = arith.subf %93, %100 : vector<32x16xf32>
    %cst_33 = arith.constant 0.000000e+00 : f32
    %102 = vector.broadcast %cst_33 : f32 to vector<32x16xf32>
    %103 = arith.maximumf %101, %102 : vector<32x16xf32>
    %104 = arith.mulf %99, %99 : vector<32x16xf32>
    %105 = arith.subf %94, %104 : vector<32x16xf32>
    %cst_34 = arith.constant 0.000000e+00 : f32
    %106 = vector.broadcast %cst_34 : f32 to vector<32x16xf32>
    %107 = arith.maximumf %105, %106 : vector<32x16xf32>
    %108 = arith.mulf %97, %99 : vector<32x16xf32>
    %109 = arith.subf %95, %108 : vector<32x16xf32>
    %cst_35 = arith.constant 9.99999974E-6 : f32
    %110 = vector.broadcast %cst_35 : f32 to vector<32x16xf32>
    %111 = arith.addf %103, %110 : vector<32x16xf32>
    %cst_36 = arith.constant 9.99999974E-6 : f32
    %112 = vector.broadcast %cst_36 : f32 to vector<32x16xf32>
    %113 = arith.addf %107, %112 : vector<32x16xf32>
    %114 = arith.mulf %111, %113 : vector<32x16xf32>
    %115 = math.rsqrt %114 : vector<32x16xf32>
    %116 = arith.mulf %109, %115 : vector<32x16xf32>
    %117 = arith.addf %90, %116 : vector<32x16xf32>
    %c0_37 = arith.constant 0 : index
    %c0_38 = arith.constant 0 : index
    %118 = vector.load %arg7[%c0_37, %c0_38] : memref<32x16xf32, #tpu.memory_space<vmem>>, vector<32x16xf32>
    tpu.vector_store %arg7[%c0_37, %c0_38], %117 {strides = array<i32>} : memref<32x16xf32, #tpu.memory_space<vmem>>, vector<32x16xf32>,
    %c0_39 = arith.constant 0 : index
    %c0_40 = arith.constant 0 : index
    %119 = vector.load %arg8[%c0_39, %c0_40] : memref<32x16xf32, #tpu.memory_space<vmem>>, vector<32x16xf32>
    %120 = vector.extract_strided_slice %89 {offsets = [160, 0], sizes = [32, 16], strides = [1, 1]} : vector<320x16xf32> to vector<32x16xf32>
    %121 = vector.extract_strided_slice %89 {offsets = [192, 0], sizes = [32, 16], strides = [1, 1]} : vector<320x16xf32> to vector<32x16xf32>
    %122 = vector.extract_strided_slice %89 {offsets = [224, 0], sizes = [32, 16], strides = [1, 1]} : vector<320x16xf32> to vector<32x16xf32>
    %123 = vector.extract_strided_slice %89 {offsets = [256, 0], sizes = [32, 16], strides = [1, 1]} : vector<320x16xf32> to vector<32x16xf32>
    %124 = vector.extract_strided_slice %89 {offsets = [288, 0], sizes = [32, 16], strides = [1, 1]} : vector<320x16xf32> to vector<32x16xf32>
    %cst_41 = arith.constant 8.100000e+01 : f32
    %125 = vector.broadcast %cst_41 : f32 to vector<32x16xf32>
    %126 = arith.divf %120, %125 : vector<32x16xf32>
    %cst_42 = arith.constant 8.100000e+01 : f32
    %127 = vector.broadcast %cst_42 : f32 to vector<32x16xf32>
    %128 = arith.divf %121, %127 : vector<32x16xf32>
    %129 = arith.mulf %126, %126 : vector<32x16xf32>
    %130 = arith.subf %122, %129 : vector<32x16xf32>
    %cst_43 = arith.constant 0.000000e+00 : f32
    %131 = vector.broadcast %cst_43 : f32 to vector<32x16xf32>
    %132 = arith.maximumf %130, %131 : vector<32x16xf32>
    %133 = arith.mulf %128, %128 : vector<32x16xf32>
    %134 = arith.subf %123, %133 : vector<32x16xf32>
    %cst_44 = arith.constant 0.000000e+00 : f32
    %135 = vector.broadcast %cst_44 : f32 to vector<32x16xf32>
    %136 = arith.maximumf %134, %135 : vector<32x16xf32>
    %137 = arith.mulf %126, %128 : vector<32x16xf32>
    %138 = arith.subf %124, %137 : vector<32x16xf32>
    %cst_45 = arith.constant 9.99999974E-6 : f32
    %139 = vector.broadcast %cst_45 : f32 to vector<32x16xf32>
    %140 = arith.addf %132, %139 : vector<32x16xf32>
    %cst_46 = arith.constant 9.99999974E-6 : f32
    %141 = vector.broadcast %cst_46 : f32 to vector<32x16xf32>
    %142 = arith.addf %136, %141 : vector<32x16xf32>
    %143 = arith.mulf %140, %142 : vector<32x16xf32>
    %144 = math.rsqrt %143 : vector<32x16xf32>
    %145 = arith.mulf %138, %144 : vector<32x16xf32>
    %146 = arith.addf %119, %145 : vector<32x16xf32>
    %c0_47 = arith.constant 0 : index
    %c0_48 = arith.constant 0 : index
    %147 = vector.load %arg8[%c0_47, %c0_48] : memref<32x16xf32, #tpu.memory_space<vmem>>, vector<32x16xf32>
    tpu.vector_store %arg8[%c0_47, %c0_48], %146 {strides = array<i32>} : memref<32x16xf32, #tpu.memory_space<vmem>>, vector<32x16xf32>,
    %c0_i32_49 = arith.constant 0 : i32
    %148 = arith.cmpi eq, %arg1, %c0_i32_49 : i32
    %149 = arith.extui %148 : i1 to i32
    %c0_i32_50 = arith.constant 0 : i32
    %150 = arith.cmpi ne, %149, %c0_i32_50 : i32
    scf.if %150 {
      %cst_51 = arith.constant 0.000000e+00 : f32
      %151 = vector.broadcast %cst_51 : f32 to vector<1x1x1xf32>
      %c0_52 = arith.constant 0 : index
      %c0_53 = arith.constant 0 : index
      %152 = vector.load %arg7[%c0_52, %c0_53] : memref<32x16xf32, #tpu.memory_space<vmem>>, vector<32x16xf32>
      %153 = vector.shape_cast %152 : vector<32x16xf32> to vector<1x32x16xf32>
      %cst_54 = arith.constant dense<0.000000e+00> : vector<1xf32>
      %154 = vector.multi_reduction <add>, %153, %cst_54 [1, 2] : vector<1x32x16xf32> to vector<1xf32>
      %155 = vector.shape_cast %154 : vector<1xf32> to vector<1x1x1xf32>
      %156 = vector.extract %155[0, 0, 0] : f32 from vector<1x1x1xf32>
      %157 = vector.broadcast %156 : f32 to vector<1x1x1xf32>
      %158 = arith.addf %151, %157 : vector<1x1x1xf32>
      %c0_55 = arith.constant 0 : index
      %c0_56 = arith.constant 0 : index
      %c0_57 = arith.constant 0 : index
      %159 = vector.load %arg5[%c0_55, %c0_56, %c0_57] : memref<1x1x1xf32, #tpu.memory_space<vmem>>, vector<1x1x1xf32>
      tpu.vector_store %arg5[%c0_55, %c0_56, %c0_57], %158 {strides = array<i32>} : memref<1x1x1xf32, #tpu.memory_space<vmem>>, vector<1x1x1xf32>,
      %cst_58 = arith.constant 0.000000e+00 : f32
      %160 = vector.broadcast %cst_58 : f32 to vector<1x1x1xf32>
      %c0_59 = arith.constant 0 : index
      %c0_60 = arith.constant 0 : index
      %161 = vector.load %arg8[%c0_59, %c0_60] : memref<32x16xf32, #tpu.memory_space<vmem>>, vector<32x16xf32>
      %162 = vector.shape_cast %161 : vector<32x16xf32> to vector<1x32x16xf32>
      %cst_61 = arith.constant dense<0.000000e+00> : vector<1xf32>
      %163 = vector.multi_reduction <add>, %162, %cst_61 [1, 2] : vector<1x32x16xf32> to vector<1xf32>
      %164 = vector.shape_cast %163 : vector<1xf32> to vector<1x1x1xf32>
      %165 = vector.extract %164[0, 0, 0] : f32 from vector<1x1x1xf32>
      %166 = vector.broadcast %165 : f32 to vector<1x1x1xf32>
      %167 = arith.addf %160, %166 : vector<1x1x1xf32>
      %c0_62 = arith.constant 0 : index
      %c0_63 = arith.constant 0 : index
      %c0_64 = arith.constant 0 : index
      %168 = vector.load %arg6[%c0_62, %c0_63, %c0_64] : memref<1x1x1xf32, #tpu.memory_space<vmem>>, vector<1x1x1xf32>
      tpu.vector_store %arg6[%c0_62, %c0_63, %c0_64], %167 {strides = array<i32>} : memref<1x1x1xf32, #tpu.memory_space<vmem>>, vector<1x1x1xf32>,
    } else {
    }
    return
  }
  func.func @transform_0(%arg0: i32, %arg1: i32) -> (i32, i32) {
    %c1_i32 = arith.constant 1 : i32
    %0 = arith.muli %arg0, %c1_i32 : i32
    %1 = arith.addi %0, %arg1 : i32
    %c0_i32 = arith.constant 0 : i32
    %c0_i32_0 = arith.constant 0 : i32
    return %1, %c0_i32 : i32, i32
  }
  func.func @transform_1(%arg0: i32, %arg1: i32) -> (i32, i32) {
    %c1_i32 = arith.constant 1 : i32
    %0 = arith.muli %arg0, %c1_i32 : i32
    %1 = arith.addi %0, %arg1 : i32
    %c0_i32 = arith.constant 0 : i32
    %c0_i32_0 = arith.constant 0 : i32
    return %1, %c0_i32 : i32, i32
  }
  func.func @transform_2(%arg0: i32, %arg1: i32) -> (i32, i32, i32, i32) {
    %c1_i32 = arith.constant 1 : i32
    %0 = arith.muli %arg0, %c1_i32 : i32
    %1 = arith.addi %0, %arg1 : i32
    %c0_i32 = arith.constant 0 : i32
    %c0_i32_0 = arith.constant 0 : i32
    %c0_i32_1 = arith.constant 0 : i32
    %c0_i32_2 = arith.constant 0 : i32
    return %1, %c0_i32, %c0_i32_0, %c0_i32_1 : i32, i32, i32, i32
  }
  func.func @transform_3(%arg0: i32, %arg1: i32) -> (i32, i32, i32) {
    %c0_i32 = arith.constant 0 : i32
    %c0_i32_0 = arith.constant 0 : i32
    %c0_i32_1 = arith.constant 0 : i32
    return %arg0, %c0_i32, %c0_i32_0 : i32, i32, i32
  }
  func.func @transform_4(%arg0: i32, %arg1: i32) -> (i32, i32, i32) {
    %c0_i32 = arith.constant 0 : i32
    %c0_i32_0 = arith.constant 0 : i32
    %c0_i32_1 = arith.constant 0 : i32
    return %arg0, %c0_i32, %c0_i32_0 : i32, i32, i32
  }
}

</mosaic_0001>

<llo_original>
// kernel: tpu_custom_call.1
$region0: #{tpu_custom_call.1}
  #allocation0 [shape = 'u32[]', space=smem, size = 0x4, offset = 0x4, fixed_abs, tag = 'smem constant byte address 0x4 - core index']
  #allocation1 [shape = 'u32[144,128]{1,0:T(1,128)}', space=vmem, size = 0x12000, scoped, tag = 'internal scratch']
  #allocation2 [shape = 'f32[32,16]{1,0:T(8,128)}', space=vmem, size = 0x4000, scoped, tag = 'scratch operand']
  #allocation3 [shape = 'f32[32,16]{1,0:T(8,128)}', space=vmem, size = 0x4000, scoped, tag = 'scratch operand']
  #allocation4 [shape = 'f32[336,16]{1,0:T(8,128)}', space=vmem, size = 0x2a000, scoped, tag = 'scratch operand']
  %s0 = inlined_call_operand.vmem [shape: f32[32,16], index: 0, kind: input, shape index: {}]
  %s1 = inlined_call_operand.vmem [shape: f32[32,16], index: 1, kind: input, shape index: {}]
  %s2 = inlined_call_operand.vmem [shape: f32[2,2,16,16], index: 2, kind: input, shape index: {}]
  %s3 = inlined_call_operand.hbm [shape: f32[1,1,1], index: 3, kind: output, shape index: {0}]
  %s4 = inlined_call_operand.hbm [shape: f32[1,1,1], index: 4, kind: output, shape index: {1}]
  %5 = xla_tuple %s3, %s4
  %s6 = sld [smem:[#allocation0]]
  $region38: #{tpu_custom_call.1} parent=0
    _
  %s8 = ssub.s32 1, %s6
  %s9 = scalar_select 0, %s8, %s6
  $region1: #{tpu_custom_call.1} parent=0
    #allocation5 [shape = 'u8[512]{0}', space=vmem, size = 0x400, scoped, tag = 'output window, operand 0, single buffered']
    #allocation6 [shape = 's32[1]{0}', space=sflag, size = 0x4, scoped, tag = 'scoped memory for tpu_custom_call.1']
    #allocation7 [shape = 'u8[512]{0}', space=vmem, size = 0x400, scoped, tag = 'output window, operand 1, single buffered']
    #allocation8 [shape = 's32[1]{0}', space=sflag, size = 0x4, scoped, tag = 'scoped memory for tpu_custom_call.1']
    %10 = vsyncpa [#allocation6], 0
    %11 = vsyncpa [#allocation8], 0
    // Predicated region
    $region2: #{tpu_custom_call.1} parent=1 // pred_check
      _
    $region3: #{tpu_custom_call.1} parent=1 // pred_check_branch
      %13 = sbr.rel (0) target = $region5
    $region4: #{tpu_custom_call.1} parent=1 // pred_region
      %s14 = sadd.s32 0, 0
      %s15 = smul.u32 4, %s14
      %p16 = scmp.lt.s32.totalorder %s15, 3
      %s17 = scalar_select %p16, %s15, 3
      %s18 = smul.addr %s17, 8
      %s19 = scalar_lea.vmem %s0, %s18
      %s20 = sadd.s32 0, 0
      %s21 = smul.u32 4, %s20
    $region5: #{tpu_custom_call.1} parent=1 // pred_fallthru
      _
    // Predicated region
    $region6: #{tpu_custom_call.1} parent=1 // pred_check
      _
    $region7: #{tpu_custom_call.1} parent=1 // pred_check_branch
      %23 = sbr.rel (0) target = $region9
    $region8: #{tpu_custom_call.1} parent=1 // pred_region
      %s24 = sadd.s32 0, 0
      %s25 = smul.u32 4, %s24
      %p26 = scmp.lt.s32.totalorder %s25, 3
      %s27 = scalar_select %p26, %s25, 3
      %s28 = smul.addr %s27, 8
      %s29 = scalar_lea.vmem %s1, %s28
      %s30 = sadd.s32 0, 0
      %s31 = smul.u32 4, %s30
    $region9: #{tpu_custom_call.1} parent=1 // pred_fallthru
      _
    // Predicated region
    $region10: #{tpu_custom_call.1} parent=1 // pred_check
      _
    $region11: #{tpu_custom_call.1} parent=1 // pred_check_branch
      %33 = sbr.rel (0) target = $region13
    $region12: #{tpu_custom_call.1} parent=1 // pred_region
      %s34 = sadd.s32 0, 0
      %s35 = smul.u32 2, %s34
      %p36 = scmp.lt.s32.totalorder %s35, 1
      %s37 = scalar_select %p36, %s35, 1
      %s38 = smul.addr %s37, 4
      %s39 = smul.addr %s38, 8
      %s40 = scalar_lea.vmem %s2, %s39
      %s41 = sadd.s32 0, 0
      %s42 = smul.u32 2, %s41
    $region13: #{tpu_custom_call.1} parent=1 // pred_fallthru
      _
    %s43 = sadd.s32 0, 0
    %s44 = smul.u32 4, %s43
    %p45 = scmp.lt.s32.totalorder %s44, 3
    %s46 = scalar_select %p45, %s44, 3
    %s47 = smul.addr %s46, 8
    %s48 = scalar_lea.vmem %s0, %s47
    %s49 = sadd.s32 0, 0
    %s50 = smul.u32 4, %s49
    %p51 = scmp.lt.s32.totalorder %s50, 3
    %s52 = scalar_select %p51, %s50, 3
    %s53 = smul.addr %s52, 8
    %s54 = scalar_lea.vmem %s1, %s53
    %s55 = sadd.s32 0, 0
    %s56 = smul.u32 2, %s55
    %p57 = scmp.lt.s32.totalorder %s56, 1
    %s58 = scalar_select %p57, %s56, 1
    %s59 = smul.addr %s58, 4
    %s60 = smul.addr %s59, 8
    %s61 = scalar_lea.vmem %s2, %s60
    %s62 = sadd.s32 0, 0
    %s63 = smul.u32 4, %s62
    %p64 = scmp.lt.s32.totalorder %s63, 3
    %s65 = scalar_select %p64, %s63, 3
    %s66 = smul.addr %s65, 8
    %s67 = scalar_lea.vmem %s0, %s66
    %s68 = sadd.s32 0, 0
    %s69 = smul.u32 4, %s68
    %s70 = sadd.s32 0, 0
    %s71 = smul.u32 4, %s70
    %p72 = scmp.lt.s32.totalorder %s71, 3
    %s73 = scalar_select %p72, %s71, 3
    %s74 = smul.addr %s73, 8
    %s75 = scalar_lea.vmem %s1, %s74
    %s76 = sadd.s32 0, 0
    %s77 = smul.u32 4, %s76
    %s78 = sadd.s32 0, 0
    %s79 = smul.u32 2, %s78
    %p80 = scmp.lt.s32.totalorder %s79, 1
    %s81 = scalar_select %p80, %s79, 1
    %s82 = smul.addr %s81, 4
    %s83 = smul.addr %s82, 8
    %s84 = scalar_lea.vmem %s2, %s83
    %s85 = sadd.s32 0, 0
    %s86 = smul.u32 2, %s85
    %p87 = scmp.eq.s32.totalorder 0, 0
    // Predicated region
    $region14: #{tpu_custom_call.1} parent=1 // pred_check
      %p88 = pneg %p87
    $region15: #{tpu_custom_call.1} parent=1 // pred_check_branch
      %90 = sbr.rel (%p88) target = $region17
    $region16: #{tpu_custom_call.1} parent=1 // pred_region
      %vm91 = vcmask 130048
      %92 = vst.msk [vmem:[#allocation2] sm:$0xff] %vm91, 0.0
      %93 = vst.msk [vmem:[#allocation2 + $0x8] sm:$0xff] %vm91, 0.0
      %94 = vst.msk [vmem:[#allocation2 + $0x10] sm:$0xff] %vm91, 0.0
      %95 = vst.msk [vmem:[#allocation2 + $0x18] sm:$0xff] %vm91, 0.0
      %96 = vst.msk [vmem:[#allocation3] sm:$0xff] %vm91, 0.0
      %97 = vst.msk [vmem:[#allocation3 + $0x8] sm:$0xff] %vm91, 0.0
      %98 = vst.msk [vmem:[#allocation3 + $0x10] sm:$0xff] %vm91, 0.0
      %99 = vst.msk [vmem:[#allocation3 + $0x18] sm:$0xff] %vm91, 0.0
      %100 = vst.msk [vmem:[#allocation4] sm:$0xff] %vm91, 0.0
      %101 = vst.msk [vmem:[#allocation4 + $0x8] sm:$0xff] %vm91, 0.0
      %102 = vst.msk [vmem:[#allocation4 + $0x10] sm:$0xff] %vm91, 0.0
      %103 = vst.msk [vmem:[#allocation4 + $0x18] sm:$0xff] %vm91, 0.0
      %104 = vst.msk [vmem:[#allocation4 + $0x20] sm:$0xff] %vm91, 0.0
      %105 = vst.msk [vmem:[#allocation4 + $0x28] sm:$0xff] %vm91, 0.0
      %106 = vst.msk [vmem:[#allocation4 + $0x30] sm:$0xff] %vm91, 0.0
      %107 = vst.msk [vmem:[#allocation4 + $0x38] sm:$0xff] %vm91, 0.0
      %108 = vst.msk [vmem:[#allocation4 + $0x40] sm:$0xff] %vm91, 0.0
      %109 = vst.msk [vmem:[#allocation4 + $0x48] sm:$0xff] %vm91, 0.0
      %110 = vst.msk [vmem:[#allocation4 + $0x50] sm:$0xff] %vm91, 0.0
      %111 = vst.msk [vmem:[#allocation4 + $0x58] sm:$0xff] %vm91, 0.0
      %112 = vst.msk [vmem:[#allocation4 + $0x60] sm:$0xff] %vm91, 0.0
      %113 = vst.msk [vmem:[#allocation4 + $0x68] sm:$0xff] %vm91, 0.0
      %114 = vst.msk [vmem:[#allocation4 + $0x70] sm:$0xff] %vm91, 0.0
      %115 = vst.msk [vmem:[#allocation4 + $0x78] sm:$0xff] %vm91, 0.0
      %116 = vst.msk [vmem:[#allocation4 + $0x80] sm:$0xff] %vm91, 0.0
      %117 = vst.msk [vmem:[#allocation4 + $0x88] sm:$0xff] %vm91, 0.0
      %118 = vst.msk [vmem:[#allocation4 + $0x90] sm:$0xff] %vm91, 0.0
      %119 = vst.msk [vmem:[#allocation4 + $0x98] sm:$0xff] %vm91, 0.0
      %120 = vst.msk [vmem:[#allocation4 + $0xa0] sm:$0xff] %vm91, 0.0
      %121 = vst.msk [vmem:[#allocation4 + $0xa8] sm:$0xff] %vm91, 0.0
      %122 = vst.msk [vmem:[#allocation4 + $0xb0] sm:$0xff] %vm91, 0.0
      %123 = vst.msk [vmem:[#allocation4 + $0xb8] sm:$0xff] %vm91, 0.0
      %124 = vst.msk [vmem:[#allocation4 + $0xc0] sm:$0xff] %vm91, 0.0
      %125 = vst.msk [vmem:[#allocation4 + $0xc8] sm:$0xff] %vm91, 0.0
      %126 = vst.msk [vmem:[#allocation4 + $0xd0] sm:$0xff] %vm91, 0.0
      %127 = vst.msk [vmem:[#allocation4 + $0xd8] sm:$0xff] %vm91, 0.0
      %128 = vst.msk [vmem:[#allocation4 + $0xe0] sm:$0xff] %vm91, 0.0
      %129 = vst.msk [vmem:[#allocation4 + $0xe8] sm:$0xff] %vm91, 0.0
      %130 = vst.msk [vmem:[#allocation4 + $0xf0] sm:$0xff] %vm91, 0.0
      %131 = vst.msk [vmem:[#allocation4 + $0xf8] sm:$0xff] %vm91, 0.0
      %132 = vst.msk [vmem:[#allocation4 + $0x100] sm:$0xff] %vm91, 0.0
      %133 = vst.msk [vmem:[#allocation4 + $0x108] sm:$0xff] %vm91, 0.0
      %134 = vst.msk [vmem:[#allocation4 + $0x110] sm:$0xff] %vm91, 0.0
      %135 = vst.msk [vmem:[#allocation4 + $0x118] sm:$0xff] %vm91, 0.0
      %136 = vst.msk [vmem:[#allocation4 + $0x120] sm:$0xff] %vm91, 0.0
      %137 = vst.msk [vmem:[#allocation4 + $0x128] sm:$0xff] %vm91, 0.0
      %138 = vst.msk [vmem:[#allocation4 + $0x130] sm:$0xff] %vm91, 0.0
      %139 = vst.msk [vmem:[#allocation4 + $0x138] sm:$0xff] %vm91, 0.0
      %140 = vst.msk [vmem:[#allocation4 + $0x140] sm:$0xff] %vm91, 0.0
      %141 = vst.msk [vmem:[#allocation4 + $0x148] sm:$0xff] %vm91, 0.0
    $region17: #{tpu_custom_call.1} parent=1 // pred_fallthru
      _
    %v142 = vld [vmem:[%s67] sm:$0xff]
    %v143 = vld [vmem:[%s67 + $0x8] sm:$0xff]
    %v144 = vld [vmem:[%s67 + $0x10] sm:$0xff]
    %v145 = vld [vmem:[%s67 + $0x18] sm:$0xff]
    %v146 = vld [vmem:[%s75] sm:$0xff]
    %v147 = vld [vmem:[%s75 + $0x8] sm:$0xff]
    %v148 = vld [vmem:[%s75 + $0x10] sm:$0xff]
    %v149 = vld [vmem:[%s75 + $0x18] sm:$0xff]
    %v150 = vld [vmem:[%s84] sm:$0xff]
    %v151 = vld [vmem:[%s84 + $0x8] sm:$0xff]
    %v152 = vld [vmem:[%s84 + $0x10] sm:$0xff]
    %v153 = vld [vmem:[%s84 + $0x18] sm:$0xff]
    %v154 = vld [vmem:[%s84 + $0x20] sm:$0xff]
    %v155 = vld [vmem:[%s84 + $0x28] sm:$0xff]
    %v156 = vld [vmem:[%s84 + $0x30] sm:$0xff]
    %v157 = vld [vmem:[%s84 + $0x38] sm:$0xff]
    %vm158 = vcmp.gt.f32.partialorder %v152, %v150
    %vm159 = vcmp.gt.f32.partialorder %v153, %v151
    %vm160 = vcmp.gt.f32.partialorder %v156, %v154
    %vm161 = vcmp.gt.f32.partialorder %v157, %v155
    %v162 = vsel %vm158, 1.0, 0.0
    %v163 = vsel %vm159, 1.0, 0.0
    %v164 = vsel %vm160, 1.0, 0.0
    %v165 = vsel %vm161, 1.0, 0.0
    %v166 = vsub.f32 1.0, %v162
    %v167 = vsub.f32 1.0, %v163
    %v168 = vsub.f32 1.0, %v164
    %v169 = vsub.f32 1.0, %v165
    %v170 = vmul.f32 %v166, %v142
    %v171 = vmul.f32 %v167, %v143
    %v172 = vmul.f32 %v168, %v144
    %v173 = vmul.f32 %v169, %v145
    %v174 = vmul.f32 %v166, %v146
    %v175 = vmul.f32 %v167, %v147
    %v176 = vmul.f32 %v168, %v148
    %v177 = vmul.f32 %v169, %v149
    %v178 = vmul.f32 %v162, %v142
    %v179 = vmul.f32 %v163, %v143
    %v180 = vmul.f32 %v164, %v144
    %v181 = vmul.f32 %v165, %v145
    %v182 = vmul.f32 %v162, %v146
    %v183 = vmul.f32 %v163, %v147
    %v184 = vmul.f32 %v164, %v148
    %v185 = vmul.f32 %v165, %v149
    %v186 = vmul.f32 %v170, %v170
    %v187 = vmul.f32 %v171, %v171
    %v188 = vmul.f32 %v172, %v172
    %v189 = vmul.f32 %v173, %v173
    %v190 = vmul.f32 %v174, %v174
    %v191 = vmul.f32 %v175, %v175
    %v192 = vmul.f32 %v176, %v176
    %v193 = vmul.f32 %v177, %v177
    %v194 = vmul.f32 %v170, %v174
    %v195 = vmul.f32 %v171, %v175
    %v196 = vmul.f32 %v172, %v176
    %v197 = vmul.f32 %v173, %v177
    %v198 = vmul.f32 %v178, %v178
    %v199 = vmul.f32 %v179, %v179
    %v200 = vmul.f32 %v180, %v180
    %v201 = vmul.f32 %v181, %v181
    %v202 = vmul.f32 %v182, %v182
    %v203 = vmul.f32 %v183, %v183
    %v204 = vmul.f32 %v184, %v184
    %v205 = vmul.f32 %v185, %v185
    %v206 = vmul.f32 %v178, %v182
    %v207 = vmul.f32 %v179, %v183
    %v208 = vmul.f32 %v180, %v184
    %v209 = vmul.f32 %v181, %v185
    %v210 = vlaneseq
    %v211 = vshrl.u32 %v210, 7
    %v212 = vadd.s32 %v211, 8
    %v213 = vlaneseq
    %v214 = vand.u32 %v213, 127
    %v215 = vsub.s32 %v211, %v214
    %v216 = vsub.s32 %v212, %v214
    %vm217 = vcmp.lt.s32.totalorder %v215, 0
    %v218 = vsub.s32 0, %v215
    %v219 = vsel %vm217, %v218, %v215
    %vm220 = vcmp.lt.s32.totalorder %v216, 0
    %v221 = vsub.s32 0, %v216
    %v222 = vsel %vm220, %v221, %v216
    %vm223 = vcmp.le.s32.totalorder %v219, 4
    %vm224 = vcmp.le.s32.totalorder %v222, 4
    %v225 = vsel %vm223, 1, 0
    %v226 = vsel %vm224, 1, 0
    %v227 = vcvt.s32.f32 %v225
    %v228 = vcvt.s32.f32 %v226
    %vm229 = vcmask 130048
    %v231 = vsel %vm229, %v170, 0
    %v234 = vsel %vm229, %v171, 0
    %v237 = vsel %vm229, %v172, 0
    %v240 = vsel %vm229, %v173, 0
    %v243 = vsel %vm229, %v174, 0
    %v246 = vsel %vm229, %v175, 0
    %v249 = vsel %vm229, %v176, 0
    %v252 = vsel %vm229, %v177, 0
    %v255 = vsel %vm229, %v186, 0
    %v258 = vsel %vm229, %v187, 0
    %v261 = vsel %vm229, %v188, 0
    %v264 = vsel %vm229, %v189, 0
    %v267 = vsel %vm229, %v190, 0
    %v270 = vsel %vm229, %v191, 0
    %v273 = vsel %vm229, %v192, 0
    %v276 = vsel %vm229, %v193, 0
    %v279 = vsel %vm229, %v194, 0
    %v282 = vsel %vm229, %v195, 0
    %v285 = vsel %vm229, %v196, 0
    %v288 = vsel %vm229, %v197, 0
    %v291 = vsel %vm229, %v178, 0
    %v294 = vsel %vm229, %v179, 0
    %v297 = vsel %vm229, %v180, 0
    %v300 = vsel %vm229, %v181, 0
    %v303 = vsel %vm229, %v182, 0
    %v306 = vsel %vm229, %v183, 0
    %v309 = vsel %vm229, %v184, 0
    %v312 = vsel %vm229, %v185, 0
    %v315 = vsel %vm229, %v198, 0
    %v318 = vsel %vm229, %v199, 0
    %v321 = vsel %vm229, %v200, 0
    %v324 = vsel %vm229, %v201, 0
    %v327 = vsel %vm229, %v202, 0
    %v330 = vsel %vm229, %v203, 0
    %v333 = vsel %vm229, %v204, 0
    %v336 = vsel %vm229, %v205, 0
    %v339 = vsel %vm229, %v206, 0
    %v342 = vsel %vm229, %v207, 0
    %v345 = vsel %vm229, %v208, 0
    %v348 = vsel %vm229, %v209, 0
    %350 = vmatprep.subr.mxu0 0.0
    %351 = vmatpush1.msra.mxu0 0.0
    %352 = vmatprep.subr.mxu0 0.0
    %353 = vmatpush1.msra.mxu0 0.0
    %354 = vmatprep.subr.mxu0 0.0
    %355 = vmatpush1.msra.mxu0 0.0
    %356 = vmatprep.subr.mxu0 0.0
    %357 = vmatpush1.msra.mxu0 0.0
    %358 = vmatprep.subr.mxu0 0.0
    %359 = vmatpush1.msra.mxu0 0.0
    %360 = vmatprep.subr.mxu0 0.0
    %361 = vmatpush1.msra.mxu0 0.0
    %362 = vmatprep.subr.mxu0 0.0
    %363 = vmatpush1.msra.mxu0 0.0
    %364 = vmatprep.subr.mxu0 0.0
    %365 = vmatpush1.msra.mxu0 0.0
    %366 = vmatprep.subr.mxu0 0.0
    %367 = vmatpush1.msra.mxu0 0.0
    %368 = vmatprep.subr.mxu0 0.0
    %369 = vmatpush1.msra.mxu0 0.0
    %370 = vmatprep.subr.mxu0 0.0
    %371 = vmatpush1.msra.mxu0 0.0
    %372 = vmatprep.subr.mxu0 0.0
    %373 = vmatpush1.msra.mxu0 0.0
    %374 = vmatprep.subr.mxu0 0.0
    %375 = vmatpush1.msra.mxu0 0.0
    %376 = vmatprep.subr.mxu0 0.0
    %377 = vmatpush1.msra.mxu0 0.0
    %378 = vmatprep.subr.mxu0 0.0
    %379 = vmatpush1.msra.mxu0 %v228
    %380 = vmatprep.subr.mxu0 0.0
    %381 = vmatpush1.msra.mxu0 %v227
    %382 = vmatprep.subr.mxu0 0.0
    %383 = vmatpush2.msra.mxu0 0.0
    %384 = vmatprep.subr.mxu0 0.0
    %385 = vmatpush2.msra.mxu0 0.0
    %386 = vmatprep.subr.mxu0 0.0
    %387 = vmatpush2.msra.mxu0 0.0
    %388 = vmatprep.subr.mxu0 0.0
    %389 = vmatpush2.msra.mxu0 0.0
    %390 = vmatprep.subr.mxu0 0.0
    %391 = vmatpush2.msra.mxu0 0.0
    %392 = vmatprep.subr.mxu0 0.0
    %393 = vmatpush2.msra.mxu0 0.0
    %394 = vmatprep.subr.mxu0 0.0
    %395 = vmatpush2.msra.mxu0 0.0
    %396 = vmatprep.subr.mxu0 0.0
    %397 = vmatpush2.msra.mxu0 0.0
    %398 = vmatprep.subr.mxu0 0.0
    %399 = vmatpush2.msra.mxu0 0.0
    %400 = vmatprep.subr.mxu0 0.0
    %401 = vmatpush2.msra.mxu0 0.0
    %402 = vmatprep.subr.mxu0 0.0
    %403 = vmatpush2.msra.mxu0 0.0
    %404 = vmatprep.subr.mxu0 0.0
    %405 = vmatpush2.msra.mxu0 0.0
    %406 = vmatprep.subr.mxu0 0.0
    %407 = vmatpush2.msra.mxu0 0.0
    %408 = vmatprep.subr.mxu0 0.0
    %409 = vmatpush2.msra.mxu0 0.0
    %410 = vmatprep.subr.mxu0 0.0
    %411 = vmatpush2.msra.mxu0 0.0
    %412 = vmatprep.subr.mxu0 0.0
    %413 = vmatpush2.msra.mxu0 0.0
    %414 = vmatprep.mubr.f32.mxu0 0.0
    %415 = vmatmul.mubr.f32.gmra.mxu0 %v231
    %v416 = vpop.f32.mrf.mxu0
    %v417 = vadd.f32 0.0, %v416
    %v418 = vpop.f32.mrf.mxu0
    %419 = vmatprep.mubr.f32.mxu0 0.0
    %420 = vmatmul.mubr.f32.gmra.mxu0 %v234
    %v421 = vpop.f32.mrf.mxu0
    %v422 = vadd.f32 0.0, %v421
    %v423 = vpop.f32.mrf.mxu0
    %424 = vmatprep.mubr.f32.mxu0 0.0
    %425 = vmatmul.mubr.f32.gmra.mxu0 %v237
    %v426 = vpop.f32.mrf.mxu0
    %v427 = vadd.f32 0.0, %v426
    %v428 = vpop.f32.mrf.mxu0
    %429 = vmatprep.mubr.f32.mxu0 0.0
    %430 = vmatmul.mubr.f32.gmra.mxu0 %v240
    %v431 = vpop.f32.mrf.mxu0
    %v432 = vadd.f32 0.0, %v431
    %v433 = vpop.f32.mrf.mxu0
    %434 = vmatprep.mubr.f32.mxu0 0.0
    %435 = vmatmul.mubr.f32.gmra.mxu0 %v243
    %v436 = vpop.f32.mrf.mxu0
    %v437 = vadd.f32 0.0, %v436
    %v438 = vpop.f32.mrf.mxu0
    %439 = vmatprep.mubr.f32.mxu0 0.0
    %440 = vmatmul.mubr.f32.gmra.mxu0 %v246
    %v441 = vpop.f32.mrf.mxu0
    %v442 = vadd.f32 0.0, %v441
    %v443 = vpop.f32.mrf.mxu0
    %444 = vmatprep.mubr.f32.mxu0 0.0
    %445 = vmatmul.mubr.f32.gmra.mxu0 %v249
    %v446 = vpop.f32.mrf.mxu0
    %v447 = vadd.f32 0.0, %v446
    %v448 = vpop.f32.mrf.mxu0
    %449 = vmatprep.mubr.f32.mxu0 0.0
    %450 = vmatmul.mubr.f32.gmra.mxu0 %v252
    %v451 = vpop.f32.mrf.mxu0
    %v452 = vadd.f32 0.0, %v451
    %v453 = vpop.f32.mrf.mxu0
    %454 = vmatprep.mubr.f32.mxu0 0.0
    %455 = vmatmul.mubr.f32.gmra.mxu0 %v255
    %v456 = vpop.f32.mrf.mxu0
    %v457 = vadd.f32 0.0, %v456
    %v458 = vpop.f32.mrf.mxu0
    %459 = vmatprep.mubr.f32.mxu0 0.0
    %460 = vmatmul.mubr.f32.gmra.mxu0 %v258
    %v461 = vpop.f32.mrf.mxu0
    %v462 = vadd.f32 0.0, %v461
    %v463 = vpop.f32.mrf.mxu0
    %464 = vmatprep.mubr.f32.mxu0 0.0
    %465 = vmatmul.mubr.f32.gmra.mxu0 %v261
    %v466 = vpop.f32.mrf.mxu0
    %v467 = vadd.f32 0.0, %v466
    %v468 = vpop.f32.mrf.mxu0
    %469 = vmatprep.mubr.f32.mxu0 0.0
    %470 = vmatmul.mubr.f32.gmra.mxu0 %v264
    %v471 = vpop.f32.mrf.mxu0
    %v472 = vadd.f32 0.0, %v471
    %v473 = vpop.f32.mrf.mxu0
    %474 = vmatprep.mubr.f32.mxu0 0.0
    %475 = vmatmul.mubr.f32.gmra.mxu0 %v267
    %v476 = vpop.f32.mrf.mxu0
    %v477 = vadd.f32 0.0, %v476
    %v478 = vpop.f32.mrf.mxu0
    %479 = vmatprep.mubr.f32.mxu0 0.0
    %480 = vmatmul.mubr.f32.gmra.mxu0 %v270
    %v481 = vpop.f32.mrf.mxu0
    %v482 = vadd.f32 0.0, %v481
    %v483 = vpop.f32.mrf.mxu0
    %484 = vmatprep.mubr.f32.mxu0 0.0
    %485 = vmatmul.mubr.f32.gmra.mxu0 %v273
    %v486 = vpop.f32.mrf.mxu0
    %v487 = vadd.f32 0.0, %v486
    %v488 = vpop.f32.mrf.mxu0
    %489 = vmatprep.mubr.f32.mxu0 0.0
    %490 = vmatmul.mubr.f32.gmra.mxu0 %v276
    %v491 = vpop.f32.mrf.mxu0
    %v492 = vadd.f32 0.0, %v491
    %v493 = vpop.f32.mrf.mxu0
    %494 = vmatprep.mubr.f32.mxu0 0.0
    %495 = vmatmul.mubr.f32.gmra.mxu0 %v279
    %v496 = vpop.f32.mrf.mxu0
    %v497 = vadd.f32 0.0, %v496
    %v498 = vpop.f32.mrf.mxu0
    %499 = vmatprep.mubr.f32.mxu0 0.0
    %500 = vmatmul.mubr.f32.gmra.mxu0 %v282
    %v501 = vpop.f32.mrf.mxu0
    %v502 = vadd.f32 0.0, %v501
    %v503 = vpop.f32.mrf.mxu0
    %504 = vmatprep.mubr.f32.mxu0 0.0
    %505 = vmatmul.mubr.f32.gmra.mxu0 %v285
    %v506 = vpop.f32.mrf.mxu0
    %v507 = vadd.f32 0.0, %v506
    %v508 = vpop.f32.mrf.mxu0
    %509 = vmatprep.mubr.f32.mxu0 0.0
    %510 = vmatmul.mubr.f32.gmra.mxu0 %v288
    %v511 = vpop.f32.mrf.mxu0
    %v512 = vadd.f32 0.0, %v511
    %v513 = vpop.f32.mrf.mxu0
    %514 = vmatprep.mubr.f32.mxu0 0.0
    %515 = vmatmul.mubr.f32.gmra.mxu0 %v291
    %v516 = vpop.f32.mrf.mxu0
    %v517 = vadd.f32 0.0, %v516
    %v518 = vpop.f32.mrf.mxu0
    %519 = vmatprep.mubr.f32.mxu0 0.0
    %520 = vmatmul.mubr.f32.gmra.mxu0 %v294
    %v521 = vpop.f32.mrf.mxu0
    %v522 = vadd.f32 0.0, %v521
    %v523 = vpop.f32.mrf.mxu0
    %524 = vmatprep.mubr.f32.mxu0 0.0
    %525 = vmatmul.mubr.f32.gmra.mxu0 %v297
    %v526 = vpop.f32.mrf.mxu0
    %v527 = vadd.f32 0.0, %v526
    %v528 = vpop.f32.mrf.mxu0
    %529 = vmatprep.mubr.f32.mxu0 0.0
    %530 = vmatmul.mubr.f32.gmra.mxu0 %v300
    %v531 = vpop.f32.mrf.mxu0
    %v532 = vadd.f32 0.0, %v531
    %v533 = vpop.f32.mrf.mxu0
    %534 = vmatprep.mubr.f32.mxu0 0.0
    %535 = vmatmul.mubr.f32.gmra.mxu0 %v303
    %v536 = vpop.f32.mrf.mxu0
    %v537 = vadd.f32 0.0, %v536
    %v538 = vpop.f32.mrf.mxu0
    %539 = vmatprep.mubr.f32.mxu0 0.0
    %540 = vmatmul.mubr.f32.gmra.mxu0 %v306
    %v541 = vpop.f32.mrf.mxu0
    %v542 = vadd.f32 0.0, %v541
    %v543 = vpop.f32.mrf.mxu0
    %544 = vmatprep.mubr.f32.mxu0 0.0
    %545 = vmatmul.mubr.f32.gmra.mxu0 %v309
    %v546 = vpop.f32.mrf.mxu0
    %v547 = vadd.f32 0.0, %v546
    %v548 = vpop.f32.mrf.mxu0
    %549 = vmatprep.mubr.f32.mxu0 0.0
    %550 = vmatmul.mubr.f32.gmra.mxu0 %v312
    %v551 = vpop.f32.mrf.mxu0
    %v552 = vadd.f32 0.0, %v551
    %v553 = vpop.f32.mrf.mxu0
    %554 = vmatprep.mubr.f32.mxu0 0.0
    %555 = vmatmul.mubr.f32.gmra.mxu0 %v315
    %v556 = vpop.f32.mrf.mxu0
    %v557 = vadd.f32 0.0, %v556
    %v558 = vpop.f32.mrf.mxu0
    %559 = vmatprep.mubr.f32.mxu0 0.0
    %560 = vmatmul.mubr.f32.gmra.mxu0 %v318
    %v561 = vpop.f32.mrf.mxu0
    %v562 = vadd.f32 0.0, %v561
    %v563 = vpop.f32.mrf.mxu0
    %564 = vmatprep.mubr.f32.mxu0 0.0
    %565 = vmatmul.mubr.f32.gmra.mxu0 %v321
    %v566 = vpop.f32.mrf.mxu0
    %v567 = vadd.f32 0.0, %v566
    %v568 = vpop.f32.mrf.mxu0
    %569 = vmatprep.mubr.f32.mxu0 0.0
    %570 = vmatmul.mubr.f32.gmra.mxu0 %v324
    %v571 = vpop.f32.mrf.mxu0
    %v572 = vadd.f32 0.0, %v571
    %v573 = vpop.f32.mrf.mxu0
    %574 = vmatprep.mubr.f32.mxu0 0.0
    %575 = vmatmul.mubr.f32.gmra.mxu0 %v327
    %v576 = vpop.f32.mrf.mxu0
    %v577 = vadd.f32 0.0, %v576
    %v578 = vpop.f32.mrf.mxu0
    %579 = vmatprep.mubr.f32.mxu0 0.0
    %580 = vmatmul.mubr.f32.gmra.mxu0 %v330
    %v581 = vpop.f32.mrf.mxu0
    %v582 = vadd.f32 0.0, %v581
    %v583 = vpop.f32.mrf.mxu0
    %584 = vmatprep.mubr.f32.mxu0 0.0
    %585 = vmatmul.mubr.f32.gmra.mxu0 %v333
    %v586 = vpop.f32.mrf.mxu0
    %v587 = vadd.f32 0.0, %v586
    %v588 = vpop.f32.mrf.mxu0
    %589 = vmatprep.mubr.f32.mxu0 0.0
    %590 = vmatmul.mubr.f32.gmra.mxu0 %v336
    %v591 = vpop.f32.mrf.mxu0
    %v592 = vadd.f32 0.0, %v591
    %v593 = vpop.f32.mrf.mxu0
    %594 = vmatprep.mubr.f32.mxu0 0.0
    %595 = vmatmul.mubr.f32.gmra.mxu0 %v339
    %v596 = vpop.f32.mrf.mxu0
    %v597 = vadd.f32 0.0, %v596
    %v598 = vpop.f32.mrf.mxu0
    %599 = vmatprep.mubr.f32.mxu0 0.0
    %600 = vmatmul.mubr.f32.gmra.mxu0 %v342
    %v601 = vpop.f32.mrf.mxu0
    %v602 = vadd.f32 0.0, %v601
    %v603 = vpop.f32.mrf.mxu0
    %604 = vmatprep.mubr.f32.mxu0 0.0
    %605 = vmatmul.mubr.f32.gmra.mxu0 %v345
    %v606 = vpop.f32.mrf.mxu0
    %v607 = vadd.f32 0.0, %v606
    %v608 = vpop.f32.mrf.mxu0
    %609 = vmatprep.mubr.f32.mxu0 0.0
    %610 = vmatmul.mubr.f32.gmra.mxu0 %v348
    %v611 = vpop.f32.mrf.mxu0
    %v612 = vadd.f32 0.0, %v611
    %v613 = vpop.f32.mrf.mxu0
    %614 = vdwg.mxu0
    %615 = vst.msk [vmem:[#allocation4 + $0x8] sm:$0xff] %vm229, %v417
    %616 = vst.msk [vmem:[#allocation4 + $0x10] sm:$0xff] %vm229, %v422
    %617 = vst.msk [vmem:[#allocation4 + $0x18] sm:$0xff] %vm229, %v427
    %618 = vst.msk [vmem:[#allocation4 + $0x20] sm:$0xff] %vm229, %v432
    %619 = vst.msk [vmem:[#allocation4 + $0x28] sm:$0xff] %vm229, %v437
    %620 = vst.msk [vmem:[#allocation4 + $0x30] sm:$0xff] %vm229, %v442
    %621 = vst.msk [vmem:[#allocation4 + $0x38] sm:$0xff] %vm229, %v447
    %622 = vst.msk [vmem:[#allocation4 + $0x40] sm:$0xff] %vm229, %v452
    %623 = vst.msk [vmem:[#allocation4 + $0x48] sm:$0xff] %vm229, %v457
    %624 = vst.msk [vmem:[#allocation4 + $0x50] sm:$0xff] %vm229, %v462
    %625 = vst.msk [vmem:[#allocation4 + $0x58] sm:$0xff] %vm229, %v467
    %626 = vst.msk [vmem:[#allocation4 + $0x60] sm:$0xff] %vm229, %v472
    %627 = vst.msk [vmem:[#allocation4 + $0x68] sm:$0xff] %vm229, %v477
    %628 = vst.msk [vmem:[#allocation4 + $0x70] sm:$0xff] %vm229, %v482
    %629 = vst.msk [vmem:[#allocation4 + $0x78] sm:$0xff] %vm229, %v487
    %630 = vst.msk [vmem:[#allocation4 + $0x80] sm:$0xff] %vm229, %v492
    %631 = vst.msk [vmem:[#allocation4 + $0x88] sm:$0xff] %vm229, %v497
    %632 = vst.msk [vmem:[#allocation4 + $0x90] sm:$0xff] %vm229, %v502
    %633 = vst.msk [vmem:[#allocation4 + $0x98] sm:$0xff] %vm229, %v507
    %634 = vst.msk [vmem:[#allocation4 + $0xa0] sm:$0xff] %vm229, %v512
    %635 = vst.msk [vmem:[#allocation4 + $0xa8] sm:$0xff] %vm229, %v517
    %636 = vst.msk [vmem:[#allocation4 + $0xb0] sm:$0xff] %vm229, %v522
    %637 = vst.msk [vmem:[#allocation4 + $0xb8] sm:$0xff] %vm229, %v527
    %638 = vst.msk [vmem:[#allocation4 + $0xc0] sm:$0xff] %vm229, %v532
    %639 = vst.msk [vmem:[#allocation4 + $0xc8] sm:$0xff] %vm229, %v537
    %640 = vst.msk [vmem:[#allocation4 + $0xd0] sm:$0xff] %vm229, %v542
    %641 = vst.msk [vmem:[#allocation4 + $0xd8] sm:$0xff] %vm229, %v547
    %642 = vst.msk [vmem:[#allocation4 + $0xe0] sm:$0xff] %vm229, %v552
    %643 = vst.msk [vmem:[#allocation4 + $0xe8] sm:$0xff] %vm229, %v557
    %644 = vst.msk [vmem:[#allocation4 + $0xf0] sm:$0xff] %vm229, %v562
    %645 = vst.msk [vmem:[#allocation4 + $0xf8] sm:$0xff] %vm229, %v567
    %646 = vst.msk [vmem:[#allocation4 + $0x100] sm:$0xff] %vm229, %v572
    %647 = vst.msk [vmem:[#allocation4 + $0x108] sm:$0xff] %vm229, %v577
    %648 = vst.msk [vmem:[#allocation4 + $0x110] sm:$0xff] %vm229, %v582
    %649 = vst.msk [vmem:[#allocation4 + $0x118] sm:$0xff] %vm229, %v587
    %650 = vst.msk [vmem:[#allocation4 + $0x120] sm:$0xff] %vm229, %v592
    %651 = vst.msk [vmem:[#allocation4 + $0x128] sm:$0xff] %vm229, %v597
    %652 = vst.msk [vmem:[#allocation4 + $0x130] sm:$0xff] %vm229, %v602
    %653 = vst.msk [vmem:[#allocation4 + $0x138] sm:$0xff] %vm229, %v607
    %654 = vst.msk [vmem:[#allocation4 + $0x140] sm:$0xff] %vm229, %v612
    %v655 = vld [vmem:[#allocation4 + $0x9] sm:$0xff]
    %v656 = vld [vmem:[#allocation4 + $0x11] sm:$0xff]
    %v657 = vld [vmem:[#allocation4 + $0x19] sm:$0xff]
    %v658 = vld [vmem:[#allocation4 + $0x21] sm:$0xff]
    %v659 = vld [vmem:[#allocation4 + $0x29] sm:$0xff]
    %v660 = vld [vmem:[#allocation4 + $0x31] sm:$0xff]
    %v661 = vld [vmem:[#allocation4 + $0x39] sm:$0xff]
    %v662 = vld [vmem:[#allocation4 + $0x41] sm:$0xff]
    %v663 = vld [vmem:[#allocation4 + $0x49] sm:$0xff]
    %v664 = vld [vmem:[#allocation4 + $0x51] sm:$0xff]
    %v665 = vld [vmem:[#allocation4 + $0x59] sm:$0xff]
    %v666 = vld [vmem:[#allocation4 + $0x61] sm:$0xff]
    %v667 = vld [vmem:[#allocation4 + $0x69] sm:$0xff]
    %v668 = vld [vmem:[#allocation4 + $0x71] sm:$0xff]
    %v669 = vld [vmem:[#allocation4 + $0x79] sm:$0xff]
    %v670 = vld [vmem:[#allocation4 + $0x81] sm:$0xff]
    %v671 = vld [vmem:[#allocation4 + $0x89] sm:$0xff]
    %v672 = vld [vmem:[#allocation4 + $0x91] sm:$0xff]
    %v673 = vld [vmem:[#allocation4 + $0x99] sm:$0xff]
    %v674 = vld [vmem:[#allocation4 + $0xa1] sm:$0xff]
    %v675 = vld [vmem:[#allocation4 + $0xa9] sm:$0xff]
    %v676 = vld [vmem:[#allocation4 + $0xb1] sm:$0xff]
    %v677 = vld [vmem:[#allocation4 + $0xb9] sm:$0xff]
    %v678 = vld [vmem:[#allocation4 + $0xc1] sm:$0xff]
    %v679 = vld [vmem:[#allocation4 + $0xc9] sm:$0xff]
    %v680 = vld [vmem:[#allocation4 + $0xd1] sm:$0xff]
    %v681 = vld [vmem:[#allocation4 + $0xd9] sm:$0xff]
    %v682 = vld [vmem:[#allocation4 + $0xe1] sm:$0xff]
    %v683 = vld [vmem:[#allocation4 + $0xe9] sm:$0xff]
    %v684 = vld [vmem:[#allocation4 + $0xf1] sm:$0xff]
    %v685 = vld [vmem:[#allocation4 + $0xf9] sm:$0xff]
    %v686 = vld [vmem:[#allocation4 + $0x101] sm:$0xff]
    %v687 = vld [vmem:[#allocation4 + $0x109] sm:$0xff]
    %v688 = vld [vmem:[#allocation4 + $0x111] sm:$0xff]
    %v689 = vld [vmem:[#allocation4 + $0x119] sm:$0xff]
    %v690 = vld [vmem:[#allocation4 + $0x121] sm:$0xff]
    %v691 = vld [vmem:[#allocation4 + $0x129] sm:$0xff]
    %v692 = vld [vmem:[#allocation4 + $0x131] sm:$0xff]
    %v693 = vld [vmem:[#allocation4 + $0x139] sm:$0xff]
    %v694 = vld [vmem:[#allocation4 + $0x141] sm:$0xff]
    %v695 = vld [vmem:[#allocation4 + $0x7] sm:$0xff]
    %v696 = vld [vmem:[#allocation4 + $0xf] sm:$0xff]
    %v697 = vld [vmem:[#allocation4 + $0x17] sm:$0xff]
    %v698 = vld [vmem:[#allocation4 + $0x1f] sm:$0xff]
    %v699 = vld [vmem:[#allocation4 + $0x27] sm:$0xff]
    %v700 = vld [vmem:[#allocation4 + $0x2f] sm:$0xff]
    %v701 = vld [vmem:[#allocation4 + $0x37] sm:$0xff]
    %v702 = vld [vmem:[#allocation4 + $0x3f] sm:$0xff]
    %v703 = vld [vmem:[#allocation4 + $0x47] sm:$0xff]
    %v704 = vld [vmem:[#allocation4 + $0x4f] sm:$0xff]
    %v705 = vld [vmem:[#allocation4 + $0x57] sm:$0xff]
    %v706 = vld [vmem:[#allocation4 + $0x5f] sm:$0xff]
    %v707 = vld [vmem:[#allocation4 + $0x67] sm:$0xff]
    %v708 = vld [vmem:[#allocation4 + $0x6f] sm:$0xff]
    %v709 = vld [vmem:[#allocation4 + $0x77] sm:$0xff]
    %v710 = vld [vmem:[#allocation4 + $0x7f] sm:$0xff]
    %v711 = vld [vmem:[#allocation4 + $0x87] sm:$0xff]
    %v712 = vld [vmem:[#allocation4 + $0x8f] sm:$0xff]
    %v713 = vld [vmem:[#allocation4 + $0x97] sm:$0xff]
    %v714 = vld [vmem:[#allocation4 + $0x9f] sm:$0xff]
    %v715 = vld [vmem:[#allocation4 + $0xa7] sm:$0xff]
    %v716 = vld [vmem:[#allocation4 + $0xaf] sm:$0xff]
    %v717 = vld [vmem:[#allocation4 + $0xb7] sm:$0xff]
    %v718 = vld [vmem:[#allocation4 + $0xbf] sm:$0xff]
    %v719 = vld [vmem:[#allocation4 + $0xc7] sm:$0xff]
    %v720 = vld [vmem:[#allocation4 + $0xcf] sm:$0xff]
    %v721 = vld [vmem:[#allocation4 + $0xd7] sm:$0xff]
    %v722 = vld [vmem:[#allocation4 + $0xdf] sm:$0xff]
    %v723 = vld [vmem:[#allocation4 + $0xe7] sm:$0xff]
    %v724 = vld [vmem:[#allocation4 + $0xef] sm:$0xff]
    %v725 = vld [vmem:[#allocation4 + $0xf7] sm:$0xff]
    %v726 = vld [vmem:[#allocation4 + $0xff] sm:$0xff]
    %v727 = vld [vmem:[#allocation4 + $0x107] sm:$0xff]
    %v728 = vld [vmem:[#allocation4 + $0x10f] sm:$0xff]
    %v729 = vld [vmem:[#allocation4 + $0x117] sm:$0xff]
    %v730 = vld [vmem:[#allocation4 + $0x11f] sm:$0xff]
    %v731 = vld [vmem:[#allocation4 + $0x127] sm:$0xff]
    %v732 = vld [vmem:[#allocation4 + $0x12f] sm:$0xff]
    %v733 = vld [vmem:[#allocation4 + $0x137] sm:$0xff]
    %v734 = vld [vmem:[#allocation4 + $0x13f] sm:$0xff]
    %vm735 = vcmp.lt.s32.totalorder %v211, 15
    %vm736 = vcmp.lt.s32.totalorder %v212, 15
    %v737 = vsel %vm735, %v655, 0.0
    %v738 = vsel %vm736, %v656, 0.0
    %v739 = vsel %vm735, %v657, 0.0
    %v740 = vsel %vm736, %v658, 0.0
    %v741 = vsel %vm735, %v659, 0.0
    %v742 = vsel %vm736, %v660, 0.0
    %v743 = vsel %vm735, %v661, 0.0
    %v744 = vsel %vm736, %v662, 0.0
    %v745 = vsel %vm735, %v663, 0.0
    %v746 = vsel %vm736, %v664, 0.0
    %v747 = vsel %vm735, %v665, 0.0
    %v748 = vsel %vm736, %v666, 0.0
    %v749 = vsel %vm735, %v667, 0.0
    %v750 = vsel %vm736, %v668, 0.0
    %v751 = vsel %vm735, %v669, 0.0
    %v752 = vsel %vm736, %v670, 0.0
    %v753 = vsel %vm735, %v671, 0.0
    %v754 = vsel %vm736, %v672, 0.0
    %v755 = vsel %vm735, %v673, 0.0
    %v756 = vsel %vm736, %v674, 0.0
    %v757 = vsel %vm735, %v675, 0.0
    %v758 = vsel %vm736, %v676, 0.0
    %v759 = vsel %vm735, %v677, 0.0
    %v760 = vsel %vm736, %v678, 0.0
    %v761 = vsel %vm735, %v679, 0.0
    %v762 = vsel %vm736, %v680, 0.0
    %v763 = vsel %vm735, %v681, 0.0
    %v764 = vsel %vm736, %v682, 0.0
    %v765 = vsel %vm735, %v683, 0.0
    %v766 = vsel %vm736, %v684, 0.0
    %v767 = vsel %vm735, %v685, 0.0
    %v768 = vsel %vm736, %v686, 0.0
    %v769 = vsel %vm735, %v687, 0.0
    %v770 = vsel %vm736, %v688, 0.0
    %v771 = vsel %vm735, %v689, 0.0
    %v772 = vsel %vm736, %v690, 0.0
    %v773 = vsel %vm735, %v691, 0.0
    %v774 = vsel %vm736, %v692, 0.0
    %v775 = vsel %vm735, %v693, 0.0
    %v776 = vsel %vm736, %v694, 0.0
    %v777 = vadd.f32 %v417, %v737
    %v778 = vadd.f32 %v422, %v738
    %v779 = vadd.f32 %v427, %v739
    %v780 = vadd.f32 %v432, %v740
    %v781 = vadd.f32 %v437, %v741
    %v782 = vadd.f32 %v442, %v742
    %v783 = vadd.f32 %v447, %v743
    %v784 = vadd.f32 %v452, %v744
    %v785 = vadd.f32 %v457, %v745
    %v786 = vadd.f32 %v462, %v746
    %v787 = vadd.f32 %v467, %v747
    %v788 = vadd.f32 %v472, %v748
    %v789 = vadd.f32 %v477, %v749
    %v790 = vadd.f32 %v482, %v750
    %v791 = vadd.f32 %v487, %v751
    %v792 = vadd.f32 %v492, %v752
    %v793 = vadd.f32 %v497, %v753
    %v794 = vadd.f32 %v502, %v754
    %v795 = vadd.f32 %v507, %v755
    %v796 = vadd.f32 %v512, %v756
    %v797 = vadd.f32 %v517, %v757
    %v798 = vadd.f32 %v522, %v758
    %v799 = vadd.f32 %v527, %v759
    %v800 = vadd.f32 %v532, %v760
    %v801 = vadd.f32 %v537, %v761
    %v802 = vadd.f32 %v542, %v762
    %v803 = vadd.f32 %v547, %v763
    %v804 = vadd.f32 %v552, %v764
    %v805 = vadd.f32 %v557, %v765
    %v806 = vadd.f32 %v562, %v766
    %v807 = vadd.f32 %v567, %v767
    %v808 = vadd.f32 %v572, %v768
    %v809 = vadd.f32 %v577, %v769
    %v810 = vadd.f32 %v582, %v770
    %v811 = vadd.f32 %v587, %v771
    %v812 = vadd.f32 %v592, %v772
    %v813 = vadd.f32 %v597, %v773
    %v814 = vadd.f32 %v602, %v774
    %v815 = vadd.f32 %v607, %v775
    %v816 = vadd.f32 %v612, %v776
    %vm817 = vcmp.ge.s32.totalorder %v211, 1
    %vm818 = vcmp.ge.s32.totalorder %v212, 1
    %v819 = vsel %vm817, %v695, 0.0
    %v820 = vsel %vm818, %v696, 0.0
    %v821 = vsel %vm817, %v697, 0.0
    %v822 = vsel %vm818, %v698, 0.0
    %v823 = vsel %vm817, %v699, 0.0
    %v824 = vsel %vm818, %v700, 0.0
    %v825 = vsel %vm817, %v701, 0.0
    %v826 = vsel %vm818, %v702, 0.0
    %v827 = vsel %vm817, %v703, 0.0
    %v828 = vsel %vm818, %v704, 0.0
    %v829 = vsel %vm817, %v705, 0.0
    %v830 = vsel %vm818, %v706, 0.0
    %v831 = vsel %vm817, %v707, 0.0
    %v832 = vsel %vm818, %v708, 0.0
    %v833 = vsel %vm817, %v709, 0.0
    %v834 = vsel %vm818, %v710, 0.0
    %v835 = vsel %vm817, %v711, 0.0
    %v836 = vsel %vm818, %v712, 0.0
    %v837 = vsel %vm817, %v713, 0.0
    %v838 = vsel %vm818, %v714, 0.0
    %v839 = vsel %vm817, %v715, 0.0
    %v840 = vsel %vm818, %v716, 0.0
    %v841 = vsel %vm817, %v717, 0.0
    %v842 = vsel %vm818, %v718, 0.0
    %v843 = vsel %vm817, %v719, 0.0
    %v844 = vsel %vm818, %v720, 0.0
    %v845 = vsel %vm817, %v721, 0.0
    %v846 = vsel %vm818, %v722, 0.0
    %v847 = vsel %vm817, %v723, 0.0
    %v848 = vsel %vm818, %v724, 0.0
    %v849 = vsel %vm817, %v725, 0.0
    %v850 = vsel %vm818, %v726, 0.0
    %v851 = vsel %vm817, %v727, 0.0
    %v852 = vsel %vm818, %v728, 0.0
    %v853 = vsel %vm817, %v729, 0.0
    %v854 = vsel %vm818, %v730, 0.0
    %v855 = vsel %vm817, %v731, 0.0
    %v856 = vsel %vm818, %v732, 0.0
    %v857 = vsel %vm817, %v733, 0.0
    %v858 = vsel %vm818, %v734, 0.0
    %v859 = vadd.f32 %v777, %v819
    %v860 = vadd.f32 %v778, %v820
    %v861 = vadd.f32 %v779, %v821
    %v862 = vadd.f32 %v780, %v822
    %v863 = vadd.f32 %v781, %v823
    %v864 = vadd.f32 %v782, %v824
    %v865 = vadd.f32 %v783, %v825
    %v866 = vadd.f32 %v784, %v826
    %v867 = vadd.f32 %v785, %v827
    %v868 = vadd.f32 %v786, %v828
    %v869 = vadd.f32 %v787, %v829
    %v870 = vadd.f32 %v788, %v830
    %v871 = vadd.f32 %v789, %v831
    %v872 = vadd.f32 %v790, %v832
    %v873 = vadd.f32 %v791, %v833
    %v874 = vadd.f32 %v792, %v834
    %v875 = vadd.f32 %v793, %v835
    %v876 = vadd.f32 %v794, %v836
    %v877 = vadd.f32 %v795, %v837
    %v878 = vadd.f32 %v796, %v838
    %v879 = vadd.f32 %v797, %v839
    %v880 = vadd.f32 %v798, %v840
    %v881 = vadd.f32 %v799, %v841
    %v882 = vadd.f32 %v800, %v842
    %v883 = vadd.f32 %v801, %v843
    %v884 = vadd.f32 %v802, %v844
    %v885 = vadd.f32 %v803, %v845
    %v886 = vadd.f32 %v804, %v846
    %v887 = vadd.f32 %v805, %v847
    %v888 = vadd.f32 %v806, %v848
    %v889 = vadd.f32 %v807, %v849
    %v890 = vadd.f32 %v808, %v850
    %v891 = vadd.f32 %v809, %v851
    %v892 = vadd.f32 %v810, %v852
    %v893 = vadd.f32 %v811, %v853
    %v894 = vadd.f32 %v812, %v854
    %v895 = vadd.f32 %v813, %v855
    %v896 = vadd.f32 %v814, %v856
    %v897 = vadd.f32 %v815, %v857
    %v898 = vadd.f32 %v816, %v858
    %v899 = vld [vmem:[#allocation4 + $0xa] sm:$0xff]
    %v900 = vld [vmem:[#allocation4 + $0x12] sm:$0xff]
    %v901 = vld [vmem:[#allocation4 + $0x1a] sm:$0xff]
    %v902 = vld [vmem:[#allocation4 + $0x22] sm:$0xff]
    %v903 = vld [vmem:[#allocation4 + $0x2a] sm:$0xff]
    %v904 = vld [vmem:[#allocation4 + $0x32] sm:$0xff]
    %v905 = vld [vmem:[#allocation4 + $0x3a] sm:$0xff]
    %v906 = vld [vmem:[#allocation4 + $0x42] sm:$0xff]
    %v907 = vld [vmem:[#allocation4 + $0x4a] sm:$0xff]
    %v908 = vld [vmem:[#allocation4 + $0x52] sm:$0xff]
    %v909 = vld [vmem:[#allocation4 + $0x5a] sm:$0xff]
    %v910 = vld [vmem:[#allocation4 + $0x62] sm:$0xff]
    %v911 = vld [vmem:[#allocation4 + $0x6a] sm:$0xff]
    %v912 = vld [vmem:[#allocation4 + $0x72] sm:$0xff]
    %v913 = vld [vmem:[#allocation4 + $0x7a] sm:$0xff]
    %v914 = vld [vmem:[#allocation4 + $0x82] sm:$0xff]
    %v915 = vld [vmem:[#allocation4 + $0x8a] sm:$0xff]
    %v916 = vld [vmem:[#allocation4 + $0x92] sm:$0xff]
    %v917 = vld [vmem:[#allocation4 + $0x9a] sm:$0xff]
    %v918 = vld [vmem:[#allocation4 + $0xa2] sm:$0xff]
    %v919 = vld [vmem:[#allocation4 + $0xaa] sm:$0xff]
    %v920 = vld [vmem:[#allocation4 + $0xb2] sm:$0xff]
    %v921 = vld [vmem:[#allocation4 + $0xba] sm:$0xff]
    %v922 = vld [vmem:[#allocation4 + $0xc2] sm:$0xff]
    %v923 = vld [vmem:[#allocation4 + $0xca] sm:$0xff]
    %v924 = vld [vmem:[#allocation4 + $0xd2] sm:$0xff]
    %v925 = vld [vmem:[#allocation4 + $0xda] sm:$0xff]
    %v926 = vld [vmem:[#allocation4 + $0xe2] sm:$0xff]
    %v927 = vld [vmem:[#allocation4 + $0xea] sm:$0xff]
    %v928 = vld [vmem:[#allocation4 + $0xf2] sm:$0xff]
    %v929 = vld [vmem:[#allocation4 + $0xfa] sm:$0xff]
    %v930 = vld [vmem:[#allocation4 + $0x102] sm:$0xff]
    %v931 = vld [vmem:[#allocation4 + $0x10a] sm:$0xff]
    %v932 = vld [vmem:[#allocation4 + $0x112] sm:$0xff]
    %v933 = vld [vmem:[#allocation4 + $0x11a] sm:$0xff]
    %v934 = vld [vmem:[#allocation4 + $0x122] sm:$0xff]
    %v935 = vld [vmem:[#allocation4 + $0x12a] sm:$0xff]
    %v936 = vld [vmem:[#allocation4 + $0x132] sm:$0xff]
    %v937 = vld [vmem:[#allocation4 + $0x13a] sm:$0xff]
    %v938 = vld [vmem:[#allocation4 + $0x142] sm:$0xff]
    %v939 = vld [vmem:[#allocation4 + $0x6] sm:$0xff]
    %v940 = vld [vmem:[#allocation4 + $0xe] sm:$0xff]
    %v941 = vld [vmem:[#allocation4 + $0x16] sm:$0xff]
    %v942 = vld [vmem:[#allocation4 + $0x1e] sm:$0xff]
    %v943 = vld [vmem:[#allocation4 + $0x26] sm:$0xff]
    %v944 = vld [vmem:[#allocation4 + $0x2e] sm:$0xff]
    %v945 = vld [vmem:[#allocation4 + $0x36] sm:$0xff]
    %v946 = vld [vmem:[#allocation4 + $0x3e] sm:$0xff]
    %v947 = vld [vmem:[#allocation4 + $0x46] sm:$0xff]
    %v948 = vld [vmem:[#allocation4 + $0x4e] sm:$0xff]
    %v949 = vld [vmem:[#allocation4 + $0x56] sm:$0xff]
    %v950 = vld [vmem:[#allocation4 + $0x5e] sm:$0xff]
    %v951 = vld [vmem:[#allocation4 + $0x66] sm:$0xff]
    %v952 = vld [vmem:[#allocation4 + $0x6e] sm:$0xff]
    %v953 = vld [vmem:[#allocation4 + $0x76] sm:$0xff]
    %v954 = vld [vmem:[#allocation4 + $0x7e] sm:$0xff]
    %v955 = vld [vmem:[#allocation4 + $0x86] sm:$0xff]
    %v956 = vld [vmem:[#allocation4 + $0x8e] sm:$0xff]
    %v957 = vld [vmem:[#allocation4 + $0x96] sm:$0xff]
    %v958 = vld [vmem:[#allocation4 + $0x9e] sm:$0xff]
    %v959 = vld [vmem:[#allocation4 + $0xa6] sm:$0xff]
    %v960 = vld [vmem:[#allocation4 + $0xae] sm:$0xff]
    %v961 = vld [vmem:[#allocation4 + $0xb6] sm:$0xff]
    %v962 = vld [vmem:[#allocation4 + $0xbe] sm:$0xff]
    %v963 = vld [vmem:[#allocation4 + $0xc6] sm:$0xff]
    %v964 = vld [vmem:[#allocation4 + $0xce] sm:$0xff]
    %v965 = vld [vmem:[#allocation4 + $0xd6] sm:$0xff]
    %v966 = vld [vmem:[#allocation4 + $0xde] sm:$0xff]
    %v967 = vld [vmem:[#allocation4 + $0xe6] sm:$0xff]
    %v968 = vld [vmem:[#allocation4 + $0xee] sm:$0xff]
    %v969 = vld [vmem:[#allocation4 + $0xf6] sm:$0xff]
    %v970 = vld [vmem:[#allocation4 + $0xfe] sm:$0xff]
    %v971 = vld [vmem:[#allocation4 + $0x106] sm:$0xff]
    %v972 = vld [vmem:[#allocation4 + $0x10e] sm:$0xff]
    %v973 = vld [vmem:[#allocation4 + $0x116] sm:$0xff]
    %v974 = vld [vmem:[#allocation4 + $0x11e] sm:$0xff]
    %v975 = vld [vmem:[#allocation4 + $0x126] sm:$0xff]
    %v976 = vld [vmem:[#allocation4 + $0x12e] sm:$0xff]
    %v977 = vld [vmem:[#allocation4 + $0x136] sm:$0xff]
    %v978 = vld [vmem:[#allocation4 + $0x13e] sm:$0xff]
    %vm979 = vcmp.lt.s32.totalorder %v211, 14
    %vm980 = vcmp.lt.s32.totalorder %v212, 14
    %v981 = vsel %vm979, %v899, 0.0
    %v982 = vsel %vm980, %v900, 0.0
    %v983 = vsel %vm979, %v901, 0.0
    %v984 = vsel %vm980, %v902, 0.0
    %v985 = vsel %vm979, %v903, 0.0
    %v986 = vsel %vm980, %v904, 0.0
    %v987 = vsel %vm979, %v905, 0.0
    %v988 = vsel %vm980, %v906, 0.0
    %v989 = vsel %vm979, %v907, 0.0
    %v990 = vsel %vm980, %v908, 0.0
    %v991 = vsel %vm979, %v909, 0.0
    %v992 = vsel %vm980, %v910, 0.0
    %v993 = vsel %vm979, %v911, 0.0
    %v994 = vsel %vm980, %v912, 0.0
    %v995 = vsel %vm979, %v913, 0.0
    %v996 = vsel %vm980, %v914, 0.0
    %v997 = vsel %vm979, %v915, 0.0
    %v998 = vsel %vm980, %v916, 0.0
    %v999 = vsel %vm979, %v917, 0.0
    %v1000 = vsel %vm980, %v918, 0.0
    %v1001 = vsel %vm979, %v919, 0.0
    %v1002 = vsel %vm980, %v920, 0.0
    %v1003 = vsel %vm979, %v921, 0.0
    %v1004 = vsel %vm980, %v922, 0.0
    %v1005 = vsel %vm979, %v923, 0.0
    %v1006 = vsel %vm980, %v924, 0.0
    %v1007 = vsel %vm979, %v925, 0.0
    %v1008 = vsel %vm980, %v926, 0.0
    %v1009 = vsel %vm979, %v927, 0.0
    %v1010 = vsel %vm980, %v928, 0.0
    %v1011 = vsel %vm979, %v929, 0.0
    %v1012 = vsel %vm980, %v930, 0.0
    %v1013 = vsel %vm979, %v931, 0.0
    %v1014 = vsel %vm980, %v932, 0.0
    %v1015 = vsel %vm979, %v933, 0.0
    %v1016 = vsel %vm980, %v934, 0.0
    %v1017 = vsel %vm979, %v935, 0.0
    %v1018 = vsel %vm980, %v936, 0.0
    %v1019 = vsel %vm979, %v937, 0.0
    %v1020 = vsel %vm980, %v938, 0.0
    %v1021 = vadd.f32 %v859, %v981
    %v1022 = vadd.f32 %v860, %v982
    %v1023 = vadd.f32 %v861, %v983
    %v1024 = vadd.f32 %v862, %v984
    %v1025 = vadd.f32 %v863, %v985
    %v1026 = vadd.f32 %v864, %v986
    %v1027 = vadd.f32 %v865, %v987
    %v1028 = vadd.f32 %v866, %v988
    %v1029 = vadd.f32 %v867, %v989
    %v1030 = vadd.f32 %v868, %v990
    %v1031 = vadd.f32 %v869, %v991
    %v1032 = vadd.f32 %v870, %v992
    %v1033 = vadd.f32 %v871, %v993
    %v1034 = vadd.f32 %v872, %v994
    %v1035 = vadd.f32 %v873, %v995
    %v1036 = vadd.f32 %v874, %v996
    %v1037 = vadd.f32 %v875, %v997
    %v1038 = vadd.f32 %v876, %v998
    %v1039 = vadd.f32 %v877, %v999
    %v1040 = vadd.f32 %v878, %v1000
    %v1041 = vadd.f32 %v879, %v1001
    %v1042 = vadd.f32 %v880, %v1002
    %v1043 = vadd.f32 %v881, %v1003
    %v1044 = vadd.f32 %v882, %v1004
    %v1045 = vadd.f32 %v883, %v1005
    %v1046 = vadd.f32 %v884, %v1006
    %v1047 = vadd.f32 %v885, %v1007
    %v1048 = vadd.f32 %v886, %v1008
    %v1049 = vadd.f32 %v887, %v1009
    %v1050 = vadd.f32 %v888, %v1010
    %v1051 = vadd.f32 %v889, %v1011
    %v1052 = vadd.f32 %v890, %v1012
    %v1053 = vadd.f32 %v891, %v1013
    %v1054 = vadd.f32 %v892, %v1014
    %v1055 = vadd.f32 %v893, %v1015
    %v1056 = vadd.f32 %v894, %v1016
    %v1057 = vadd.f32 %v895, %v1017
    %v1058 = vadd.f32 %v896, %v1018
    %v1059 = vadd.f32 %v897, %v1019
    %v1060 = vadd.f32 %v898, %v1020
    %vm1061 = vcmp.ge.s32.totalorder %v211, 2
    %vm1062 = vcmp.ge.s32.totalorder %v212, 2
    %v1063 = vsel %vm1061, %v939, 0.0
    %v1064 = vsel %vm1062, %v940, 0.0
    %v1065 = vsel %vm1061, %v941, 0.0
    %v1066 = vsel %vm1062, %v942, 0.0
    %v1067 = vsel %vm1061, %v943, 0.0
    %v1068 = vsel %vm1062, %v944, 0.0
    %v1069 = vsel %vm1061, %v945, 0.0
    %v1070 = vsel %vm1062, %v946, 0.0
    %v1071 = vsel %vm1061, %v947, 0.0
    %v1072 = vsel %vm1062, %v948, 0.0
    %v1073 = vsel %vm1061, %v949, 0.0
    %v1074 = vsel %vm1062, %v950, 0.0
    %v1075 = vsel %vm1061, %v951, 0.0
    %v1076 = vsel %vm1062, %v952, 0.0
    %v1077 = vsel %vm1061, %v953, 0.0
    %v1078 = vsel %vm1062, %v954, 0.0
    %v1079 = vsel %vm1061, %v955, 0.0
    %v1080 = vsel %vm1062, %v956, 0.0
    %v1081 = vsel %vm1061, %v957, 0.0
    %v1082 = vsel %vm1062, %v958, 0.0
    %v1083 = vsel %vm1061, %v959, 0.0
    %v1084 = vsel %vm1062, %v960, 0.0
    %v1085 = vsel %vm1061, %v961, 0.0
    %v1086 = vsel %vm1062, %v962, 0.0
    %v1087 = vsel %vm1061, %v963, 0.0
    %v1088 = vsel %vm1062, %v964, 0.0
    %v1089 = vsel %vm1061, %v965, 0.0
    %v1090 = vsel %vm1062, %v966, 0.0
    %v1091 = vsel %vm1061, %v967, 0.0
    %v1092 = vsel %vm1062, %v968, 0.0
    %v1093 = vsel %vm1061, %v969, 0.0
    %v1094 = vsel %vm1062, %v970, 0.0
    %v1095 = vsel %vm1061, %v971, 0.0
    %v1096 = vsel %vm1062, %v972, 0.0
    %v1097 = vsel %vm1061, %v973, 0.0
    %v1098 = vsel %vm1062, %v974, 0.0
    %v1099 = vsel %vm1061, %v975, 0.0
    %v1100 = vsel %vm1062, %v976, 0.0
    %v1101 = vsel %vm1061, %v977, 0.0
    %v1102 = vsel %vm1062, %v978, 0.0
    %v1103 = vadd.f32 %v1021, %v1063
    %v1104 = vadd.f32 %v1022, %v1064
    %v1105 = vadd.f32 %v1023, %v1065
    %v1106 = vadd.f32 %v1024, %v1066
    %v1107 = vadd.f32 %v1025, %v1067
    %v1108 = vadd.f32 %v1026, %v1068
    %v1109 = vadd.f32 %v1027, %v1069
    %v1110 = vadd.f32 %v1028, %v1070
    %v1111 = vadd.f32 %v1029, %v1071
    %v1112 = vadd.f32 %v1030, %v1072
    %v1113 = vadd.f32 %v1031, %v1073
    %v1114 = vadd.f32 %v1032, %v1074
    %v1115 = vadd.f32 %v1033, %v1075
    %v1116 = vadd.f32 %v1034, %v1076
    %v1117 = vadd.f32 %v1035, %v1077
    %v1118 = vadd.f32 %v1036, %v1078
    %v1119 = vadd.f32 %v1037, %v1079
    %v1120 = vadd.f32 %v1038, %v1080
    %v1121 = vadd.f32 %v1039, %v1081
    %v1122 = vadd.f32 %v1040, %v1082
    %v1123 = vadd.f32 %v1041, %v1083
    %v1124 = vadd.f32 %v1042, %v1084
    %v1125 = vadd.f32 %v1043, %v1085
    %v1126 = vadd.f32 %v1044, %v1086
    %v1127 = vadd.f32 %v1045, %v1087
    %v1128 = vadd.f32 %v1046, %v1088
    %v1129 = vadd.f32 %v1047, %v1089
    %v1130 = vadd.f32 %v1048, %v1090
    %v1131 = vadd.f32 %v1049, %v1091
    %v1132 = vadd.f32 %v1050, %v1092
    %v1133 = vadd.f32 %v1051, %v1093
    %v1134 = vadd.f32 %v1052, %v1094
    %v1135 = vadd.f32 %v1053, %v1095
    %v1136 = vadd.f32 %v1054, %v1096
    %v1137 = vadd.f32 %v1055, %v1097
    %v1138 = vadd.f32 %v1056, %v1098
    %v1139 = vadd.f32 %v1057, %v1099
    %v1140 = vadd.f32 %v1058, %v1100
    %v1141 = vadd.f32 %v1059, %v1101
    %v1142 = vadd.f32 %v1060, %v1102
    %v1143 = vld [vmem:[#allocation4 + $0xb] sm:$0xff]
    %v1144 = vld [vmem:[#allocation4 + $0x13] sm:$0xff]
    %v1145 = vld [vmem:[#allocation4 + $0x1b] sm:$0xff]
    %v1146 = vld [vmem:[#allocation4 + $0x23] sm:$0xff]
    %v1147 = vld [vmem:[#allocation4 + $0x2b] sm:$0xff]
    %v1148 = vld [vmem:[#allocation4 + $0x33] sm:$0xff]
    %v1149 = vld [vmem:[#allocation4 + $0x3b] sm:$0xff]
    %v1150 = vld [vmem:[#allocation4 + $0x43] sm:$0xff]
    %v1151 = vld [vmem:[#allocation4 + $0x4b] sm:$0xff]
    %v1152 = vld [vmem:[#allocation4 + $0x53] sm:$0xff]
    %v1153 = vld [vmem:[#allocation4 + $0x5b] sm:$0xff]
    %v1154 = vld [vmem:[#allocation4 + $0x63] sm:$0xff]
    %v1155 = vld [vmem:[#allocation4 + $0x6b] sm:$0xff]
    %v1156 = vld [vmem:[#allocation4 + $0x73] sm:$0xff]
    %v1157 = vld [vmem:[#allocation4 + $0x7b] sm:$0xff]
    %v1158 = vld [vmem:[#allocation4 + $0x83] sm:$0xff]
    %v1159 = vld [vmem:[#allocation4 + $0x8b] sm:$0xff]
    %v1160 = vld [vmem:[#allocation4 + $0x93] sm:$0xff]
    %v1161 = vld [vmem:[#allocation4 + $0x9b] sm:$0xff]
    %v1162 = vld [vmem:[#allocation4 + $0xa3] sm:$0xff]
    %v1163 = vld [vmem:[#allocation4 + $0xab] sm:$0xff]
    %v1164 = vld [vmem:[#allocation4 + $0xb3] sm:$0xff]
    %v1165 = vld [vmem:[#allocation4 + $0xbb] sm:$0xff]
    %v1166 = vld [vmem:[#allocation4 + $0xc3] sm:$0xff]
    %v1167 = vld [vmem:[#allocation4 + $0xcb] sm:$0xff]
    %v1168 = vld [vmem:[#allocation4 + $0xd3] sm:$0xff]
    %v1169 = vld [vmem:[#allocation4 + $0xdb] sm:$0xff]
    %v1170 = vld [vmem:[#allocation4 + $0xe3] sm:$0xff]
    %v1171 = vld [vmem:[#allocation4 + $0xeb] sm:$0xff]
    %v1172 = vld [vmem:[#allocation4 + $0xf3] sm:$0xff]
    %v1173 = vld [vmem:[#allocation4 + $0xfb] sm:$0xff]
    %v1174 = vld [vmem:[#allocation4 + $0x103] sm:$0xff]
    %v1175 = vld [vmem:[#allocation4 + $0x10b] sm:$0xff]
    %v1176 = vld [vmem:[#allocation4 + $0x113] sm:$0xff]
    %v1177 = vld [vmem:[#allocation4 + $0x11b] sm:$0xff]
    %v1178 = vld [vmem:[#allocation4 + $0x123] sm:$0xff]
    %v1179 = vld [vmem:[#allocation4 + $0x12b] sm:$0xff]
    %v1180 = vld [vmem:[#allocation4 + $0x133] sm:$0xff]
    %v1181 = vld [vmem:[#allocation4 + $0x13b] sm:$0xff]
    %v1182 = vld [vmem:[#allocation4 + $0x143] sm:$0xff]
    %v1183 = vld [vmem:[#allocation4 + $0x5] sm:$0xff]
    %v1184 = vld [vmem:[#allocation4 + $0xd] sm:$0xff]
    %v1185 = vld [vmem:[#allocation4 + $0x15] sm:$0xff]
    %v1186 = vld [vmem:[#allocation4 + $0x1d] sm:$0xff]
    %v1187 = vld [vmem:[#allocation4 + $0x25] sm:$0xff]
    %v1188 = vld [vmem:[#allocation4 + $0x2d] sm:$0xff]
    %v1189 = vld [vmem:[#allocation4 + $0x35] sm:$0xff]
    %v1190 = vld [vmem:[#allocation4 + $0x3d] sm:$0xff]
    %v1191 = vld [vmem:[#allocation4 + $0x45] sm:$0xff]
    %v1192 = vld [vmem:[#allocation4 + $0x4d] sm:$0xff]
    %v1193 = vld [vmem:[#allocation4 + $0x55] sm:$0xff]
    %v1194 = vld [vmem:[#allocation4 + $0x5d] sm:$0xff]
    %v1195 = vld [vmem:[#allocation4 + $0x65] sm:$0xff]
    %v1196 = vld [vmem:[#allocation4 + $0x6d] sm:$0xff]
    %v1197 = vld [vmem:[#allocation4 + $0x75] sm:$0xff]
    %v1198 = vld [vmem:[#allocation4 + $0x7d] sm:$0xff]
    %v1199 = vld [vmem:[#allocation4 + $0x85] sm:$0xff]
    %v1200 = vld [vmem:[#allocation4 + $0x8d] sm:$0xff]
    %v1201 = vld [vmem:[#allocation4 + $0x95] sm:$0xff]
    %v1202 = vld [vmem:[#allocation4 + $0x9d] sm:$0xff]
    %v1203 = vld [vmem:[#allocation4 + $0xa5] sm:$0xff]
    %v1204 = vld [vmem:[#allocation4 + $0xad] sm:$0xff]
    %v1205 = vld [vmem:[#allocation4 + $0xb5] sm:$0xff]
    %v1206 = vld [vmem:[#allocation4 + $0xbd] sm:$0xff]
    %v1207 = vld [vmem:[#allocation4 + $0xc5] sm:$0xff]
    %v1208 = vld [vmem:[#allocation4 + $0xcd] sm:$0xff]
    %v1209 = vld [vmem:[#allocation4 + $0xd5] sm:$0xff]
    %v1210 = vld [vmem:[#allocation4 + $0xdd] sm:$0xff]
    %v1211 = vld [vmem:[#allocation4 + $0xe5] sm:$0xff]
    %v1212 = vld [vmem:[#allocation4 + $0xed] sm:$0xff]
    %v1213 = vld [vmem:[#allocation4 + $0xf5] sm:$0xff]
    %v1214 = vld [vmem:[#allocation4 + $0xfd] sm:$0xff]
    %v1215 = vld [vmem:[#allocation4 + $0x105] sm:$0xff]
    %v1216 = vld [vmem:[#allocation4 + $0x10d] sm:$0xff]
    %v1217 = vld [vmem:[#allocation4 + $0x115] sm:$0xff]
    %v1218 = vld [vmem:[#allocation4 + $0x11d] sm:$0xff]
    %v1219 = vld [vmem:[#allocation4 + $0x125] sm:$0xff]
    %v1220 = vld [vmem:[#allocation4 + $0x12d] sm:$0xff]
    %v1221 = vld [vmem:[#allocation4 + $0x135] sm:$0xff]
    %v1222 = vld [vmem:[#allocation4 + $0x13d] sm:$0xff]
    %vm1223 = vcmp.lt.s32.totalorder %v211, 13
    %vm1224 = vcmp.lt.s32.totalorder %v212, 13
    %v1225 = vsel %vm1223, %v1143, 0.0
    %v1226 = vsel %vm1224, %v1144, 0.0
    %v1227 = vsel %vm1223, %v1145, 0.0
    %v1228 = vsel %vm1224, %v1146, 0.0
    %v1229 = vsel %vm1223, %v1147, 0.0
    %v1230 = vsel %vm1224, %v1148, 0.0
    %v1231 = vsel %vm1223, %v1149, 0.0
    %v1232 = vsel %vm1224, %v1150, 0.0
    %v1233 = vsel %vm1223, %v1151, 0.0
    %v1234 = vsel %vm1224, %v1152, 0.0
    %v1235 = vsel %vm1223, %v1153, 0.0
    %v1236 = vsel %vm1224, %v1154, 0.0
    %v1237 = vsel %vm1223, %v1155, 0.0
    %v1238 = vsel %vm1224, %v1156, 0.0
    %v1239 = vsel %vm1223, %v1157, 0.0
    %v1240 = vsel %vm1224, %v1158, 0.0
    %v1241 = vsel %vm1223, %v1159, 0.0
    %v1242 = vsel %vm1224, %v1160, 0.0
    %v1243 = vsel %vm1223, %v1161, 0.0
    %v1244 = vsel %vm1224, %v1162, 0.0
    %v1245 = vsel %vm1223, %v1163, 0.0
    %v1246 = vsel %vm1224, %v1164, 0.0
    %v1247 = vsel %vm1223, %v1165, 0.0
    %v1248 = vsel %vm1224, %v1166, 0.0
    %v1249 = vsel %vm1223, %v1167, 0.0
    %v1250 = vsel %vm1224, %v1168, 0.0
    %v1251 = vsel %vm1223, %v1169, 0.0
    %v1252 = vsel %vm1224, %v1170, 0.0
    %v1253 = vsel %vm1223, %v1171, 0.0
    %v1254 = vsel %vm1224, %v1172, 0.0
    %v1255 = vsel %vm1223, %v1173, 0.0
    %v1256 = vsel %vm1224, %v1174, 0.0
    %v1257 = vsel %vm1223, %v1175, 0.0
    %v1258 = vsel %vm1224, %v1176, 0.0
    %v1259 = vsel %vm1223, %v1177, 0.0
    %v1260 = vsel %vm1224, %v1178, 0.0
    %v1261 = vsel %vm1223, %v1179, 0.0
    %v1262 = vsel %vm1224, %v1180, 0.0
    %v1263 = vsel %vm1223, %v1181, 0.0
    %v1264 = vsel %vm1224, %v1182, 0.0
    %v1265 = vadd.f32 %v1103, %v1225
    %v1266 = vadd.f32 %v1104, %v1226
    %v1267 = vadd.f32 %v1105, %v1227
    %v1268 = vadd.f32 %v1106, %v1228
    %v1269 = vadd.f32 %v1107, %v1229
    %v1270 = vadd.f32 %v1108, %v1230
    %v1271 = vadd.f32 %v1109, %v1231
    %v1272 = vadd.f32 %v1110, %v1232
    %v1273 = vadd.f32 %v1111, %v1233
    %v1274 = vadd.f32 %v1112, %v1234
    %v1275 = vadd.f32 %v1113, %v1235
    %v1276 = vadd.f32 %v1114, %v1236
    %v1277 = vadd.f32 %v1115, %v1237
    %v1278 = vadd.f32 %v1116, %v1238
    %v1279 = vadd.f32 %v1117, %v1239
    %v1280 = vadd.f32 %v1118, %v1240
    %v1281 = vadd.f32 %v1119, %v1241
    %v1282 = vadd.f32 %v1120, %v1242
    %v1283 = vadd.f32 %v1121, %v1243
    %v1284 = vadd.f32 %v1122, %v1244
    %v1285 = vadd.f32 %v1123, %v1245
    %v1286 = vadd.f32 %v1124, %v1246
    %v1287 = vadd.f32 %v1125, %v1247
    %v1288 = vadd.f32 %v1126, %v1248
    %v1289 = vadd.f32 %v1127, %v1249
    %v1290 = vadd.f32 %v1128, %v1250
    %v1291 = vadd.f32 %v1129, %v1251
    %v1292 = vadd.f32 %v1130, %v1252
    %v1293 = vadd.f32 %v1131, %v1253
    %v1294 = vadd.f32 %v1132, %v1254
    %v1295 = vadd.f32 %v1133, %v1255
    %v1296 = vadd.f32 %v1134, %v1256
    %v1297 = vadd.f32 %v1135, %v1257
    %v1298 = vadd.f32 %v1136, %v1258
    %v1299 = vadd.f32 %v1137, %v1259
    %v1300 = vadd.f32 %v1138, %v1260
    %v1301 = vadd.f32 %v1139, %v1261
    %v1302 = vadd.f32 %v1140, %v1262
    %v1303 = vadd.f32 %v1141, %v1263
    %v1304 = vadd.f32 %v1142, %v1264
    %vm1305 = vcmp.ge.s32.totalorder %v211, 3
    %vm1306 = vcmp.ge.s32.totalorder %v212, 3
    %v1307 = vsel %vm1305, %v1183, 0.0
    %v1308 = vsel %vm1306, %v1184, 0.0
    %v1309 = vsel %vm1305, %v1185, 0.0
    %v1310 = vsel %vm1306, %v1186, 0.0
    %v1311 = vsel %vm1305, %v1187, 0.0
    %v1312 = vsel %vm1306, %v1188, 0.0
    %v1313 = vsel %vm1305, %v1189, 0.0
    %v1314 = vsel %vm1306, %v1190, 0.0
    %v1315 = vsel %vm1305, %v1191, 0.0
    %v1316 = vsel %vm1306, %v1192, 0.0
    %v1317 = vsel %vm1305, %v1193, 0.0
    %v1318 = vsel %vm1306, %v1194, 0.0
    %v1319 = vsel %vm1305, %v1195, 0.0
    %v1320 = vsel %vm1306, %v1196, 0.0
    %v1321 = vsel %vm1305, %v1197, 0.0
    %v1322 = vsel %vm1306, %v1198, 0.0
    %v1323 = vsel %vm1305, %v1199, 0.0
    %v1324 = vsel %vm1306, %v1200, 0.0
    %v1325 = vsel %vm1305, %v1201, 0.0
    %v1326 = vsel %vm1306, %v1202, 0.0
    %v1327 = vsel %vm1305, %v1203, 0.0
    %v1328 = vsel %vm1306, %v1204, 0.0
    %v1329 = vsel %vm1305, %v1205, 0.0
    %v1330 = vsel %vm1306, %v1206, 0.0
    %v1331 = vsel %vm1305, %v1207, 0.0
    %v1332 = vsel %vm1306, %v1208, 0.0
    %v1333 = vsel %vm1305, %v1209, 0.0
    %v1334 = vsel %vm1306, %v1210, 0.0
    %v1335 = vsel %vm1305, %v1211, 0.0
    %v1336 = vsel %vm1306, %v1212, 0.0
    %v1337 = vsel %vm1305, %v1213, 0.0
    %v1338 = vsel %vm1306, %v1214, 0.0
    %v1339 = vsel %vm1305, %v1215, 0.0
    %v1340 = vsel %vm1306, %v1216, 0.0
    %v1341 = vsel %vm1305, %v1217, 0.0
    %v1342 = vsel %vm1306, %v1218, 0.0
    %v1343 = vsel %vm1305, %v1219, 0.0
    %v1344 = vsel %vm1306, %v1220, 0.0
    %v1345 = vsel %vm1305, %v1221, 0.0
    %v1346 = vsel %vm1306, %v1222, 0.0
    %v1347 = vadd.f32 %v1265, %v1307
    %v1348 = vadd.f32 %v1266, %v1308
    %v1349 = vadd.f32 %v1267, %v1309
    %v1350 = vadd.f32 %v1268, %v1310
    %v1351 = vadd.f32 %v1269, %v1311
    %v1352 = vadd.f32 %v1270, %v1312
    %v1353 = vadd.f32 %v1271, %v1313
    %v1354 = vadd.f32 %v1272, %v1314
    %v1355 = vadd.f32 %v1273, %v1315
    %v1356 = vadd.f32 %v1274, %v1316
    %v1357 = vadd.f32 %v1275, %v1317
    %v1358 = vadd.f32 %v1276, %v1318
    %v1359 = vadd.f32 %v1277, %v1319
    %v1360 = vadd.f32 %v1278, %v1320
    %v1361 = vadd.f32 %v1279, %v1321
    %v1362 = vadd.f32 %v1280, %v1322
    %v1363 = vadd.f32 %v1281, %v1323
    %v1364 = vadd.f32 %v1282, %v1324
    %v1365 = vadd.f32 %v1283, %v1325
    %v1366 = vadd.f32 %v1284, %v1326
    %v1367 = vadd.f32 %v1285, %v1327
    %v1368 = vadd.f32 %v1286, %v1328
    %v1369 = vadd.f32 %v1287, %v1329
    %v1370 = vadd.f32 %v1288, %v1330
    %v1371 = vadd.f32 %v1289, %v1331
    %v1372 = vadd.f32 %v1290, %v1332
    %v1373 = vadd.f32 %v1291, %v1333
    %v1374 = vadd.f32 %v1292, %v1334
    %v1375 = vadd.f32 %v1293, %v1335
    %v1376 = vadd.f32 %v1294, %v1336
    %v1377 = vadd.f32 %v1295, %v1337
    %v1378 = vadd.f32 %v1296, %v1338
    %v1379 = vadd.f32 %v1297, %v1339
    %v1380 = vadd.f32 %v1298, %v1340
    %v1381 = vadd.f32 %v1299, %v1341
    %v1382 = vadd.f32 %v1300, %v1342
    %v1383 = vadd.f32 %v1301, %v1343
    %v1384 = vadd.f32 %v1302, %v1344
    %v1385 = vadd.f32 %v1303, %v1345
    %v1386 = vadd.f32 %v1304, %v1346
    %v1387 = vld [vmem:[#allocation4 + $0xc] sm:$0xff]
    %v1388 = vld [vmem:[#allocation4 + $0x14] sm:$0xff]
    %v1389 = vld [vmem:[#allocation4 + $0x1c] sm:$0xff]
    %v1390 = vld [vmem:[#allocation4 + $0x24] sm:$0xff]
    %v1391 = vld [vmem:[#allocation4 + $0x2c] sm:$0xff]
    %v1392 = vld [vmem:[#allocation4 + $0x34] sm:$0xff]
    %v1393 = vld [vmem:[#allocation4 + $0x3c] sm:$0xff]
    %v1394 = vld [vmem:[#allocation4 + $0x44] sm:$0xff]
    %v1395 = vld [vmem:[#allocation4 + $0x4c] sm:$0xff]
    %v1396 = vld [vmem:[#allocation4 + $0x54] sm:$0xff]
    %v1397 = vld [vmem:[#allocation4 + $0x5c] sm:$0xff]
    %v1398 = vld [vmem:[#allocation4 + $0x64] sm:$0xff]
    %v1399 = vld [vmem:[#allocation4 + $0x6c] sm:$0xff]
    %v1400 = vld [vmem:[#allocation4 + $0x74] sm:$0xff]
    %v1401 = vld [vmem:[#allocation4 + $0x7c] sm:$0xff]
    %v1402 = vld [vmem:[#allocation4 + $0x84] sm:$0xff]
    %v1403 = vld [vmem:[#allocation4 + $0x8c] sm:$0xff]
    %v1404 = vld [vmem:[#allocation4 + $0x94] sm:$0xff]
    %v1405 = vld [vmem:[#allocation4 + $0x9c] sm:$0xff]
    %v1406 = vld [vmem:[#allocation4 + $0xa4] sm:$0xff]
    %v1407 = vld [vmem:[#allocation4 + $0xac] sm:$0xff]
    %v1408 = vld [vmem:[#allocation4 + $0xb4] sm:$0xff]
    %v1409 = vld [vmem:[#allocation4 + $0xbc] sm:$0xff]
    %v1410 = vld [vmem:[#allocation4 + $0xc4] sm:$0xff]
    %v1411 = vld [vmem:[#allocation4 + $0xcc] sm:$0xff]
    %v1412 = vld [vmem:[#allocation4 + $0xd4] sm:$0xff]
    %v1413 = vld [vmem:[#allocation4 + $0xdc] sm:$0xff]
    %v1414 = vld [vmem:[#allocation4 + $0xe4] sm:$0xff]
    %v1415 = vld [vmem:[#allocation4 + $0xec] sm:$0xff]
    %v1416 = vld [vmem:[#allocation4 + $0xf4] sm:$0xff]
    %v1417 = vld [vmem:[#allocation4 + $0xfc] sm:$0xff]
    %v1418 = vld [vmem:[#allocation4 + $0x104] sm:$0xff]
    %v1419 = vld [vmem:[#allocation4 + $0x10c] sm:$0xff]
    %v1420 = vld [vmem:[#allocation4 + $0x114] sm:$0xff]
    %v1421 = vld [vmem:[#allocation4 + $0x11c] sm:$0xff]
    %v1422 = vld [vmem:[#allocation4 + $0x124] sm:$0xff]
    %v1423 = vld [vmem:[#allocation4 + $0x12c] sm:$0xff]
    %v1424 = vld [vmem:[#allocation4 + $0x134] sm:$0xff]
    %v1425 = vld [vmem:[#allocation4 + $0x13c] sm:$0xff]
    %v1426 = vld [vmem:[#allocation4 + $0x144] sm:$0xff]
    %v1427 = vld [vmem:[#allocation4 + $0x4] sm:$0xff]
    %vm1428 = vcmp.lt.s32.totalorder %v211, 12
    %vm1429 = vcmp.lt.s32.totalorder %v212, 12
    %v1430 = vsel %vm1428, %v1387, 0.0
    %v1431 = vsel %vm1429, %v1388, 0.0
    %v1432 = vsel %vm1428, %v1389, 0.0
    %v1433 = vsel %vm1429, %v1390, 0.0
    %v1434 = vsel %vm1428, %v1391, 0.0
    %v1435 = vsel %vm1429, %v1392, 0.0
    %v1436 = vsel %vm1428, %v1393, 0.0
    %v1437 = vsel %vm1429, %v1394, 0.0
    %v1438 = vsel %vm1428, %v1395, 0.0
    %v1439 = vsel %vm1429, %v1396, 0.0
    %v1440 = vsel %vm1428, %v1397, 0.0
    %v1441 = vsel %vm1429, %v1398, 0.0
    %v1442 = vsel %vm1428, %v1399, 0.0
    %v1443 = vsel %vm1429, %v1400, 0.0
    %v1444 = vsel %vm1428, %v1401, 0.0
    %v1445 = vsel %vm1429, %v1402, 0.0
    %v1446 = vsel %vm1428, %v1403, 0.0
    %v1447 = vsel %vm1429, %v1404, 0.0
    %v1448 = vsel %vm1428, %v1405, 0.0
    %v1449 = vsel %vm1429, %v1406, 0.0
    %v1450 = vsel %vm1428, %v1407, 0.0
    %v1451 = vsel %vm1429, %v1408, 0.0
    %v1452 = vsel %vm1428, %v1409, 0.0
    %v1453 = vsel %vm1429, %v1410, 0.0
    %v1454 = vsel %vm1428, %v1411, 0.0
    %v1455 = vsel %vm1429, %v1412, 0.0
    %v1456 = vsel %vm1428, %v1413, 0.0
    %v1457 = vsel %vm1429, %v1414, 0.0
    %v1458 = vsel %vm1428, %v1415, 0.0
    %v1459 = vsel %vm1429, %v1416, 0.0
    %v1460 = vsel %vm1428, %v1417, 0.0
    %v1461 = vsel %vm1429, %v1418, 0.0
    %v1462 = vsel %vm1428, %v1419, 0.0
    %v1463 = vsel %vm1429, %v1420, 0.0
    %v1464 = vsel %vm1428, %v1421, 0.0
    %v1465 = vsel %vm1429, %v1422, 0.0
    %v1466 = vsel %vm1428, %v1423, 0.0
    %v1467 = vsel %vm1429, %v1424, 0.0
    %v1468 = vsel %vm1428, %v1425, 0.0
    %v1469 = vsel %vm1429, %v1426, 0.0
    %v1470 = vadd.f32 %v1347, %v1430
    %v1471 = vadd.f32 %v1348, %v1431
    %v1472 = vadd.f32 %v1349, %v1432
    %v1473 = vadd.f32 %v1350, %v1433
    %v1474 = vadd.f32 %v1351, %v1434
    %v1475 = vadd.f32 %v1352, %v1435
    %v1476 = vadd.f32 %v1353, %v1436
    %v1477 = vadd.f32 %v1354, %v1437
    %v1478 = vadd.f32 %v1355, %v1438
    %v1479 = vadd.f32 %v1356, %v1439
    %v1480 = vadd.f32 %v1357, %v1440
    %v1481 = vadd.f32 %v1358, %v1441
    %v1482 = vadd.f32 %v1359, %v1442
    %v1483 = vadd.f32 %v1360, %v1443
    %v1484 = vadd.f32 %v1361, %v1444
    %v1485 = vadd.f32 %v1362, %v1445
    %v1486 = vadd.f32 %v1363, %v1446
    %v1487 = vadd.f32 %v1364, %v1447
    %v1488 = vadd.f32 %v1365, %v1448
    %v1489 = vadd.f32 %v1366, %v1449
    %v1490 = vadd.f32 %v1367, %v1450
    %v1491 = vadd.f32 %v1368, %v1451
    %v1492 = vadd.f32 %v1369, %v1452
    %v1493 = vadd.f32 %v1370, %v1453
    %v1494 = vadd.f32 %v1371, %v1454
    %v1495 = vadd.f32 %v1372, %v1455
    %v1496 = vadd.f32 %v1373, %v1456
    %v1497 = vadd.f32 %v1374, %v1457
    %v1498 = vadd.f32 %v1375, %v1458
    %v1499 = vadd.f32 %v1376, %v1459
    %v1500 = vadd.f32 %v1377, %v1460
    %v1501 = vadd.f32 %v1378, %v1461
    %v1502 = vadd.f32 %v1379, %v1462
    %v1503 = vadd.f32 %v1380, %v1463
    %v1504 = vadd.f32 %v1381, %v1464
    %v1505 = vadd.f32 %v1382, %v1465
    %v1506 = vadd.f32 %v1383, %v1466
    %v1507 = vadd.f32 %v1384, %v1467
    %v1508 = vadd.f32 %v1385, %v1468
    %v1509 = vadd.f32 %v1386, %v1469
    %vm1510 = vcmp.ge.s32.totalorder %v211, 4
    %vm1511 = vcmp.ge.s32.totalorder %v212, 4
    %v1512 = vsel %vm1510, %v1427, 0.0
    %v1513 = vsel %vm1511, %v1387, 0.0
    %v1514 = vsel %vm1510, %v1388, 0.0
    %v1515 = vsel %vm1511, %v1389, 0.0
    %v1516 = vsel %vm1510, %v1390, 0.0
    %v1517 = vsel %vm1511, %v1391, 0.0
    %v1518 = vsel %vm1510, %v1392, 0.0
    %v1519 = vsel %vm1511, %v1393, 0.0
    %v1520 = vsel %vm1510, %v1394, 0.0
    %v1521 = vsel %vm1511, %v1395, 0.0
    %v1522 = vsel %vm1510, %v1396, 0.0
    %v1523 = vsel %vm1511, %v1397, 0.0
    %v1524 = vsel %vm1510, %v1398, 0.0
    %v1525 = vsel %vm1511, %v1399, 0.0
    %v1526 = vsel %vm1510, %v1400, 0.0
    %v1527 = vsel %vm1511, %v1401, 0.0
    %v1528 = vsel %vm1510, %v1402, 0.0
    %v1529 = vsel %vm1511, %v1403, 0.0
    %v1530 = vsel %vm1510, %v1404, 0.0
    %v1531 = vsel %vm1511, %v1405, 0.0
    %v1532 = vsel %vm1510, %v1406, 0.0
    %v1533 = vsel %vm1511, %v1407, 0.0
    %v1534 = vsel %vm1510, %v1408, 0.0
    %v1535 = vsel %vm1511, %v1409, 0.0
    %v1536 = vsel %vm1510, %v1410, 0.0
    %v1537 = vsel %vm1511, %v1411, 0.0
    %v1538 = vsel %vm1510, %v1412, 0.0
    %v1539 = vsel %vm1511, %v1413, 0.0
    %v1540 = vsel %vm1510, %v1414, 0.0
    %v1541 = vsel %vm1511, %v1415, 0.0
    %v1542 = vsel %vm1510, %v1416, 0.0
    %v1543 = vsel %vm1511, %v1417, 0.0
    %v1544 = vsel %vm1510, %v1418, 0.0
    %v1545 = vsel %vm1511, %v1419, 0.0
    %v1546 = vsel %vm1510, %v1420, 0.0
    %v1547 = vsel %vm1511, %v1421, 0.0
    %v1548 = vsel %vm1510, %v1422, 0.0
    %v1549 = vsel %vm1511, %v1423, 0.0
    %v1550 = vsel %vm1510, %v1424, 0.0
    %v1551 = vsel %vm1511, %v1425, 0.0
    %v1552 = vadd.f32 %v1470, %v1512
    %v1553 = vadd.f32 %v1471, %v1513
    %v1554 = vadd.f32 %v1472, %v1514
    %v1555 = vadd.f32 %v1473, %v1515
    %v1556 = vadd.f32 %v1474, %v1516
    %v1557 = vadd.f32 %v1475, %v1517
    %v1558 = vadd.f32 %v1476, %v1518
    %v1559 = vadd.f32 %v1477, %v1519
    %v1560 = vadd.f32 %v1478, %v1520
    %v1561 = vadd.f32 %v1479, %v1521
    %v1562 = vadd.f32 %v1480, %v1522
    %v1563 = vadd.f32 %v1481, %v1523
    %v1564 = vadd.f32 %v1482, %v1524
    %v1565 = vadd.f32 %v1483, %v1525
    %v1566 = vadd.f32 %v1484, %v1526
    %v1567 = vadd.f32 %v1485, %v1527
    %v1568 = vadd.f32 %v1486, %v1528
    %v1569 = vadd.f32 %v1487, %v1529
    %v1570 = vadd.f32 %v1488, %v1530
    %v1571 = vadd.f32 %v1489, %v1531
    %v1572 = vadd.f32 %v1490, %v1532
    %v1573 = vadd.f32 %v1491, %v1533
    %v1574 = vadd.f32 %v1492, %v1534
    %v1575 = vadd.f32 %v1493, %v1535
    %v1576 = vadd.f32 %v1494, %v1536
    %v1577 = vadd.f32 %v1495, %v1537
    %v1578 = vadd.f32 %v1496, %v1538
    %v1579 = vadd.f32 %v1497, %v1539
    %v1580 = vadd.f32 %v1498, %v1540
    %v1581 = vadd.f32 %v1499, %v1541
    %v1582 = vadd.f32 %v1500, %v1542
    %v1583 = vadd.f32 %v1501, %v1543
    %v1584 = vadd.f32 %v1502, %v1544
    %v1585 = vadd.f32 %v1503, %v1545
    %v1586 = vadd.f32 %v1504, %v1546
    %v1587 = vadd.f32 %v1505, %v1547
    %v1588 = vadd.f32 %v1506, %v1548
    %v1589 = vadd.f32 %v1507, %v1549
    %v1590 = vadd.f32 %v1508, %v1550
    %v1591 = vadd.f32 %v1509, %v1551
    %v1592 = vld [vmem:[#allocation2] sm:$0xff]
    %v1593 = vld [vmem:[#allocation2 + $0x8] sm:$0xff]
    %v1594 = vld [vmem:[#allocation2 + $0x10] sm:$0xff]
    %v1595 = vld [vmem:[#allocation2 + $0x18] sm:$0xff]
    %v1596 = vrcp.pop 81.0
    %v1597 = vmul.f32 %v1552, %v1596
    %v1598 = vmul.f32 %v1553, %v1596
    %v1599 = vmul.f32 %v1554, %v1596
    %v1600 = vmul.f32 %v1555, %v1596
    %v1601 = vmul.f32 %v1556, %v1596
    %v1602 = vmul.f32 %v1557, %v1596
    %v1603 = vmul.f32 %v1558, %v1596
    %v1604 = vmul.f32 %v1559, %v1596
    %v1605 = vmul.f32 %v1597, %v1597
    %v1606 = vmul.f32 %v1598, %v1598
    %v1607 = vmul.f32 %v1599, %v1599
    %v1608 = vmul.f32 %v1600, %v1600
    %v1609 = vsub.f32 %v1560, %v1605
    %v1610 = vsub.f32 %v1561, %v1606
    %v1611 = vsub.f32 %v1562, %v1607
    %v1612 = vsub.f32 %v1563, %v1608
    %v1613 = vmax.f32 %v1609, 0.0
    %v1614 = vmax.f32 %v1610, 0.0
    %v1615 = vmax.f32 %v1611, 0.0
    %v1616 = vmax.f32 %v1612, 0.0
    %v1617 = vmul.f32 %v1601, %v1601
    %v1618 = vmul.f32 %v1602, %v1602
    %v1619 = vmul.f32 %v1603, %v1603
    %v1620 = vmul.f32 %v1604, %v1604
    %v1621 = vsub.f32 %v1564, %v1617
    %v1622 = vsub.f32 %v1565, %v1618
    %v1623 = vsub.f32 %v1566, %v1619
    %v1624 = vsub.f32 %v1567, %v1620
    %v1625 = vmax.f32 %v1621, 0.0
    %v1626 = vmax.f32 %v1622, 0.0
    %v1627 = vmax.f32 %v1623, 0.0
    %v1628 = vmax.f32 %v1624, 0.0
    %v1629 = vmul.f32 %v1597, %v1601
    %v1630 = vmul.f32 %v1598, %v1602
    %v1631 = vmul.f32 %v1599, %v1603
    %v1632 = vmul.f32 %v1600, %v1604
    %v1633 = vsub.f32 %v1568, %v1629
    %v1634 = vsub.f32 %v1569, %v1630
    %v1635 = vsub.f32 %v1570, %v1631
    %v1636 = vsub.f32 %v1571, %v1632
    %v1637 = vadd.f32 %v1613, 1e-05
    %v1638 = vadd.f32 %v1614, 1e-05
    %v1639 = vadd.f32 %v1615, 1e-05
    %v1640 = vadd.f32 %v1616, 1e-05
    %v1641 = vadd.f32 %v1625, 1e-05
    %v1642 = vadd.f32 %v1626, 1e-05
    %v1643 = vadd.f32 %v1627, 1e-05
    %v1644 = vadd.f32 %v1628, 1e-05
    %v1645 = vmul.f32 %v1637, %v1641
    %v1646 = vmul.f32 %v1638, %v1642
    %v1647 = vmul.f32 %v1639, %v1643
    %v1648 = vmul.f32 %v1640, %v1644
    %v1649 = vrsqrt.pop %v1645
    %v1650 = vrsqrt.pop %v1646
    %v1651 = vrsqrt.pop %v1647
    %v1652 = vrsqrt.pop %v1648
    %v1653 = vmul.f32 %v1633, %v1649
    %v1654 = vmul.f32 %v1634, %v1650
    %v1655 = vmul.f32 %v1635, %v1651
    %v1656 = vmul.f32 %v1636, %v1652
    %v1657 = vadd.f32 %v1592, %v1653
    %v1658 = vadd.f32 %v1593, %v1654
    %v1659 = vadd.f32 %v1594, %v1655
    %v1660 = vadd.f32 %v1595, %v1656
    %1661 = vst.msk [vmem:[#allocation2] sm:$0xff] %vm229, %v1657
    %1662 = vst.msk [vmem:[#allocation2 + $0x8] sm:$0xff] %vm229, %v1658
    %1663 = vst.msk [vmem:[#allocation2 + $0x10] sm:$0xff] %vm229, %v1659
    %1664 = vst.msk [vmem:[#allocation2 + $0x18] sm:$0xff] %vm229, %v1660
    %v1665 = vld [vmem:[#allocation3] sm:$0xff]
    %v1666 = vld [vmem:[#allocation3 + $0x8] sm:$0xff]
    %v1667 = vld [vmem:[#allocation3 + $0x10] sm:$0xff]
    %v1668 = vld [vmem:[#allocation3 + $0x18] sm:$0xff]
    %v1669 = vmul.f32 %v1572, %v1596
    %v1670 = vmul.f32 %v1573, %v1596
    %v1671 = vmul.f32 %v1574, %v1596
    %v1672 = vmul.f32 %v1575, %v1596
    %v1673 = vmul.f32 %v1576, %v1596
    %v1674 = vmul.f32 %v1577, %v1596
    %v1675 = vmul.f32 %v1578, %v1596
    %v1676 = vmul.f32 %v1579, %v1596
    %v1677 = vmul.f32 %v1669, %v1669
    %v1678 = vmul.f32 %v1670, %v1670
    %v1679 = vmul.f32 %v1671, %v1671
    %v1680 = vmul.f32 %v1672, %v1672
    %v1681 = vsub.f32 %v1580, %v1677
    %v1682 = vsub.f32 %v1581, %v1678
    %v1683 = vsub.f32 %v1582, %v1679
    %v1684 = vsub.f32 %v1583, %v1680
    %v1685 = vmax.f32 %v1681, 0.0
    %v1686 = vmax.f32 %v1682, 0.0
    %v1687 = vmax.f32 %v1683, 0.0
    %v1688 = vmax.f32 %v1684, 0.0
    %v1689 = vmul.f32 %v1673, %v1673
    %v1690 = vmul.f32 %v1674, %v1674
    %v1691 = vmul.f32 %v1675, %v1675
    %v1692 = vmul.f32 %v1676, %v1676
    %v1693 = vsub.f32 %v1584, %v1689
    %v1694 = vsub.f32 %v1585, %v1690
    %v1695 = vsub.f32 %v1586, %v1691
    %v1696 = vsub.f32 %v1587, %v1692
    %v1697 = vmax.f32 %v1693, 0.0
    %v1698 = vmax.f32 %v1694, 0.0
    %v1699 = vmax.f32 %v1695, 0.0
    %v1700 = vmax.f32 %v1696, 0.0
    %v1701 = vmul.f32 %v1669, %v1673
    %v1702 = vmul.f32 %v1670, %v1674
    %v1703 = vmul.f32 %v1671, %v1675
    %v1704 = vmul.f32 %v1672, %v1676
    %v1705 = vsub.f32 %v1588, %v1701
    %v1706 = vsub.f32 %v1589, %v1702
    %v1707 = vsub.f32 %v1590, %v1703
    %v1708 = vsub.f32 %v1591, %v1704
    %v1709 = vadd.f32 %v1685, 1e-05
    %v1710 = vadd.f32 %v1686, 1e-05
    %v1711 = vadd.f32 %v1687, 1e-05
    %v1712 = vadd.f32 %v1688, 1e-05
    %v1713 = vadd.f32 %v1697, 1e-05
    %v1714 = vadd.f32 %v1698, 1e-05
    %v1715 = vadd.f32 %v1699, 1e-05
    %v1716 = vadd.f32 %v1700, 1e-05
    %v1717 = vmul.f32 %v1709, %v1713
    %v1718 = vmul.f32 %v1710, %v1714
    %v1719 = vmul.f32 %v1711, %v1715
    %v1720 = vmul.f32 %v1712, %v1716
    %v1721 = vrsqrt.pop %v1717
    %v1722 = vrsqrt.pop %v1718
    %v1723 = vrsqrt.pop %v1719
    %v1724 = vrsqrt.pop %v1720
    %v1725 = vmul.f32 %v1705, %v1721
    %v1726 = vmul.f32 %v1706, %v1722
    %v1727 = vmul.f32 %v1707, %v1723
    %v1728 = vmul.f32 %v1708, %v1724
    %v1729 = vadd.f32 %v1665, %v1725
    %v1730 = vadd.f32 %v1666, %v1726
    %v1731 = vadd.f32 %v1667, %v1727
    %v1732 = vadd.f32 %v1668, %v1728
    %1733 = vst.msk [vmem:[#allocation3] sm:$0xff] %vm229, %v1729
    %1734 = vst.msk [vmem:[#allocation3 + $0x8] sm:$0xff] %vm229, %v1730
    %1735 = vst.msk [vmem:[#allocation3 + $0x10] sm:$0xff] %vm229, %v1731
    %1736 = vst.msk [vmem:[#allocation3 + $0x18] sm:$0xff] %vm229, %v1732
    // Predicated region
    $region18: #{tpu_custom_call.1} parent=1 // pred_check
      %p1737 = pneg %p87
    $region19: #{tpu_custom_call.1} parent=1 // pred_check_branch
      %1739 = sbr.rel (%p1737) target = $region21
    $region20: #{tpu_custom_call.1} parent=1 // pred_region
      %v1740 = vld [vmem:[#allocation2] sm:$0xff]
      %v1741 = vld [vmem:[#allocation2 + $0x8] sm:$0xff]
      %v1742 = vld [vmem:[#allocation2 + $0x10] sm:$0xff]
      %v1743 = vld [vmem:[#allocation2 + $0x18] sm:$0xff]
      %v1744 = vsel %vm229, %v1740, 0.0
      %v1745 = vsel %vm229, %v1741, 0.0
      %v1746 = vadd.f32 %v1744, %v1745
      %v1747 = vsel %vm229, %v1742, 0.0
      %v1748 = vadd.f32 %v1746, %v1747
      %v1749 = vsel %vm229, %v1743, 0.0
      %v1750 = vadd.f32 %v1748, %v1749
      %1751 = vadd.xlane.f32.xlu0 %v1750
      %v1752 = vpop.xlane.xlu0 %1751
      %v1753 = vrot.slane %v1752, 4
      %v1754 = vadd.f32 %v1752, %v1753
      %v1755 = vrot.slane %v1754, 2
      %v1756 = vadd.f32 %v1754, %v1755
      %v1757 = vrot.slane %v1756, 1
      %v1758 = vadd.f32 %v1756, %v1757
      %s1759 = vtos %v1758
      %v1760 = vstv %s1759
      %v1761 = vadd.f32 %v1760, 0.0
      %vm1762 = vcmask 0
      %1763 = vst.msk [vmem:[#allocation5] sm:$0x1] %vm1762, %v1761
      %v1764 = vld [vmem:[#allocation3] sm:$0xff]
      %v1765 = vld [vmem:[#allocation3 + $0x8] sm:$0xff]
      %v1766 = vld [vmem:[#allocation3 + $0x10] sm:$0xff]
      %v1767 = vld [vmem:[#allocation3 + $0x18] sm:$0xff]
      %v1768 = vsel %vm229, %v1764, 0.0
      %v1769 = vsel %vm229, %v1765, 0.0
      %v1770 = vadd.f32 %v1768, %v1769
      %v1771 = vsel %vm229, %v1766, 0.0
      %v1772 = vadd.f32 %v1770, %v1771
      %v1773 = vsel %vm229, %v1767, 0.0
      %v1774 = vadd.f32 %v1772, %v1773
      %1775 = vadd.xlane.f32.xlu0 %v1774
      %v1776 = vpop.xlane.xlu0 %1775
      %v1777 = vrot.slane %v1776, 4
      %v1778 = vadd.f32 %v1776, %v1777
      %v1779 = vrot.slane %v1778, 2
      %v1780 = vadd.f32 %v1778, %v1779
      %v1781 = vrot.slane %v1780, 1
      %v1782 = vadd.f32 %v1780, %v1781
      %s1783 = vtos %v1782
      %v1784 = vstv %s1783
      %v1785 = vadd.f32 %v1784, 0.0
      %1786 = vst.msk [vmem:[#allocation7] sm:$0x1] %vm1762, %v1785
    $region21: #{tpu_custom_call.1} parent=1 // pred_fallthru
      _
    // Predicated region
    $region22: #{tpu_custom_call.1} parent=1 // pred_check
      _
    $region23: #{tpu_custom_call.1} parent=1 // pred_check_branch
      %1788 = sbr.rel (0) target = $region25
    $region24: #{tpu_custom_call.1} parent=1 // pred_region
      %s1790 = ssub.s32 16, 16
      %1791 = vsyncadd [#allocation6], %s1790
      %s1793 = sshll.u32 [#allocation5], 4
      %s1794 = int_to_ptr.vmem [resolvable:$true] %s1793
      %1796 = dma.vmem_to_hbm [thread:$0]  %s1794, 16, %s3, [#allocation6]
    $region25: #{tpu_custom_call.1} parent=1 // pred_fallthru
      _
    // Predicated region
    $region26: #{tpu_custom_call.1} parent=1 // pred_check
      _
    $region27: #{tpu_custom_call.1} parent=1 // pred_check_branch
      %1798 = sbr.rel (0) target = $region29
    $region28: #{tpu_custom_call.1} parent=1 // pred_region
      %s1800 = ssub.s32 16, 16
      %1801 = vsyncadd [#allocation8], %s1800
      %s1803 = sshll.u32 [#allocation7], 4
      %s1804 = int_to_ptr.vmem [resolvable:$true] %s1803
      %1806 = dma.vmem_to_hbm [thread:$0]  %s1804, 16, %s4, [#allocation8]
    $region29: #{tpu_custom_call.1} parent=1 // pred_fallthru
      _
    // Predicated region
    $region30: #{tpu_custom_call.1} parent=1 // pred_check
      _
    $region31: #{tpu_custom_call.1} parent=1 // pred_check_branch
      %1808 = sbr.rel (0) target = $region33
    $region32: #{tpu_custom_call.1} parent=1 // pred_region
      %1809 = dma.done [#allocation6], 16
    $region33: #{tpu_custom_call.1} parent=1 // pred_fallthru
      _
    // Predicated region
    $region34: #{tpu_custom_call.1} parent=1 // pred_check
      _
    $region35: #{tpu_custom_call.1} parent=1 // pred_check_branch
      %1811 = sbr.rel (0) target = $region37
    $region36: #{tpu_custom_call.1} parent=1 // pred_region
      %1812 = dma.done [#allocation8], 16
    $region37: #{tpu_custom_call.1} parent=1 // pred_fallthru
      _
    %1813 = vsyncpa [#allocation6], 1
    %1814 = vsyncpa [#allocation8], 1

</llo_original>
